<compile_context>
chip_gen: v5e
topology: v5e:2x2
jax: 0.10.0
libtpu: 0.0.40
codegen_flags: <defaults>
</compile_context>

<pallas_src>
import math

import jax
import jax.numpy as jnp
from jax.experimental import pallas as pl
from jax.experimental.pallas import tpu as pltpu

SEQ_LEN = 8
D_MODEL = 32
N_HEADS = 4
D_HEAD = D_MODEL // N_HEADS
D_FF = 4 * D_MODEL
N_CLASSES = 6
LN_EPS = 1e-5
HS = N_HEADS * SEQ_LEN          # head-blocked (expanded) key/value axis


def _layer_norm(x2d, gamma, beta):
    mean = jnp.mean(x2d, axis=-1, keepdims=True)
    var = jnp.mean(jnp.square(x2d - mean), axis=-1, keepdims=True)
    return (x2d - mean) * jax.lax.rsqrt(var + LN_EPS) * gamma + beta


def wibitad_kernel(x_ref,
                   wqkv_ref, bqkv_ref, wo_ref, bo_ref,
                   ln1_g_ref, ln1_b_ref,
                   w1_ref, b1_ref, w2_ref, b2_ref,
                   ln2_g_ref, ln2_b_ref,
                   wc_ref, bc_ref,
                   hmask_ref, gsum_ref, csel_ref, ccol_ref,
                   out_ref):
    f32, bf16 = jnp.float32, jnp.bfloat16

    x = x_ref[...].astype(f32)                            # (TB, S, D)
    TB, S, D = x.shape
    x2 = x.reshape(TB * S, D)

    # ---- fused QKV projection: one (TB*S, D) @ (D, 3D) MXU call ----
    qkv = jnp.dot(x2.astype(bf16), wqkv_ref[...],
                  preferred_element_type=f32) + bqkv_ref[...]
    q3 = qkv[:, 0 * D:1 * D].reshape(TB, S, D).astype(bf16)
    k3 = qkv[:, 1 * D:2 * D].reshape(TB, S, D).astype(bf16)
    v3 = qkv[:, 2 * D:3 * D].reshape(TB, S, D).astype(bf16)

    # ---- multi-head attention via block-diagonal head expansion (no loop) ----
    # k_exp/v_exp row block h holds K/V masked to feature block h; the per-head
    # scores / context then collapse to single batched einsums over K=D, and
    # the context comes out directly in concatenated-head order.
    hmask = hmask_ref[...]                                 # (H*S, D) bf16
    k_exp = jnp.concatenate([k3] * N_HEADS, axis=1) * hmask   # (TB, H*S, D)
    v_exp = jnp.concatenate([v3] * N_HEADS, axis=1) * hmask   # (TB, H*S, D)

    scale = 1.0 / math.sqrt(D_HEAD)
    scores = jnp.einsum('bqd,bkd->bqk', q3, k_exp,
                        preferred_element_type=f32) * scale   # (TB, S, H*S)
    # Row max is a uniform shift within every head group -> softmax-invariant.
    # TODO(synk): per-group max would be safer for extreme score magnitudes.
    scores = scores - jnp.max(scores, axis=-1, keepdims=True)
    e = jnp.exp(scores)
    # Per-head-group sums broadcast back to every lane of the group via one
    # exact f32 matmul against the static 0/1 group mask.
    denom = jnp.dot(e.reshape(TB * S, HS), gsum_ref[...],
                    preferred_element_type=f32).reshape(TB, S, HS)
    pattn = e * pl.reciprocal(denom, approx=True)          # EUP reciprocal
    ctx = jnp.einsum('bqk,bkd->bqd', pattn.astype(bf16), v_exp,
                     preferred_element_type=f32)            # (TB, S, D)

    attn = jnp.dot(ctx.reshape(TB * S, D).astype(bf16), wo_ref[...],
                   preferred_element_type=f32) + bo_ref[...]

    # dropout (p=0.1) is identity at inference.
    y = _layer_norm(x2 + attn, ln1_g_ref[...], ln1_b_ref[...])   # (TB*S, D)

    # ---- feed-forward ----
    h = jnp.dot(y.astype(bf16), w1_ref[...],
                preferred_element_type=f32) + b1_ref[...]
    h = jnp.maximum(h, 0.0)
    h = jnp.dot(h.astype(bf16), w2_ref[...],
                preferred_element_type=f32) + b2_ref[...]
    y = _layer_norm(y + h, ln2_g_ref[...], ln2_b_ref[...])       # (TB*S, D)

    # ---- flatten(start_dim=1) + classifier, no relayout / no scratch loop ----
    # part[b*S+s, s'*C+c] = sum_d y[b,s,d] * Wc[c, s'*D+d]; keep only s'==s via
    # the static select mask + sublane reduce, then collapse the S lane blocks
    # with a tiny exact 0/1 matmul.
    part = jnp.dot(y.astype(bf16), wc_ref[...],
                   preferred_element_type=f32)                   # (TB*S, S*C)
    part = part.reshape(TB, S, S * N_CLASSES) * csel_ref[...]
    summed = jnp.sum(part, axis=1)                               # (TB, S*C)
    logits = jnp.dot(summed, ccol_ref[...],
                     preferred_element_type=f32) + bc_ref[...]   # (TB, C)

    # nn.Softmax() -> dim=1 on a 2-D input; exact divide (output-facing, tiny).
    logits = logits - jnp.max(logits, axis=-1, keepdims=True)
    ez = jnp.exp(logits)
    out_ref[...] = ez / jnp.sum(ez, axis=-1, keepdims=True)


def init_params(key):
    ks = jax.random.split(key, 5)
    s = 0.02
    return {
        'w_qkv': s * jax.random.normal(ks[0], (D_MODEL, 3 * D_MODEL), jnp.float32),
        'b_qkv': jnp.zeros((1, 3 * D_MODEL), jnp.float32),
        'w_o': s * jax.random.normal(ks[1], (D_MODEL, D_MODEL), jnp.float32),
        'b_o': jnp.zeros((1, D_MODEL), jnp.float32),
        'ln1_g': jnp.ones((1, D_MODEL), jnp.float32),
        'ln1_b': jnp.zeros((1, D_MODEL), jnp.float32),
        'w1': s * jax.random.normal(ks[2], (D_MODEL, D_FF), jnp.float32),
        'b1': jnp.zeros((1, D_FF), jnp.float32),
        'w2': s * jax.random.normal(ks[3], (D_FF, D_MODEL), jnp.float32),
        'b2': jnp.zeros((1, D_MODEL), jnp.float32),
        'ln2_g': jnp.ones((1, D_MODEL), jnp.float32),
        'ln2_b': jnp.zeros((1, D_MODEL), jnp.float32),
        # nn.Linear(S*D, 6).weight is (6, S*D); stored transposed as (S*D, 6),
        # whose row order matches torch.flatten(start_dim=1) of an (S, D) sample.
        'w_c': s * jax.random.normal(ks[4], (SEQ_LEN * D_MODEL, N_CLASSES),
                                     jnp.float32),
        'b_c': jnp.zeros((1, N_CLASSES), jnp.float32),
    }


def _choose_tile(batch: int) -> int:
    """Largest power-of-two batch tile <= 128 that still gives >= 2 grid steps
    whenever the batch allows it (v7x: 2 TensorCores shard the batch axis).
    The wrapper pads the batch to a multiple of the tile."""
    tb = 128
    while tb > 8 and batch < 2 * tb:
        tb //= 2
    return tb


def _prepare_constants(p):
    """Wrapper-side weight prep: bf16 matmul weights, precomputed static masks."""
    bf16, f32 = jnp.bfloat16, jnp.float32
    # Block-diagonal head mask + per-head-group sum mask (static, computed once).
    hs_rows = jnp.arange(HS) // SEQ_LEN
    head_mask = (hs_rows[:, None]
                 == (jnp.arange(D_MODEL) // D_HEAD)[None, :]).astype(bf16)
    group_sum = (hs_rows[:, None] == hs_rows[None, :]).astype(f32)
    # Classifier flatten folded into the weight layout + select/collapse masks.
    kk = jnp.arange(SEQ_LEN * N_CLASSES)
    cls_sel = (jnp.arange(SEQ_LEN)[:, None]
               == (kk // N_CLASSES)[None, :]).astype(f32)          # (S, S*C)
    cls_col = ((kk % N_CLASSES)[:, None]
               == jnp.arange(N_CLASSES)[None, :]).astype(f32)      # (S*C, C)
    # wc_flat[d, s*C + c] = w_c[s*D + d, c]
    wc_flat = (p['w_c'].reshape(SEQ_LEN, D_MODEL, N_CLASSES)
               .transpose(1, 0, 2)
               .reshape(D_MODEL, SEQ_LEN * N_CLASSES)).astype(bf16)

    return (
        p['w_qkv'].astype(bf16), p['b_qkv'],
        p['w_o'].astype(bf16), p['b_o'],
        p['ln1_g'], p['ln1_b'],
        p['w1'].astype(bf16), p['b1'],
        p['w2'].astype(bf16), p['b2'],
        p['ln2_g'], p['ln2_b'],
        wc_flat, p['b_c'],
        head_mask, group_sum, cls_sel, cls_col,
    )


def wibitad_forward(x, p):
    B = x.shape[0]
    TB = _choose_tile(B)
    padded_b = pl.cdiv(B, TB) * TB
    if padded_b != B:
        x = jnp.pad(x, ((0, padded_b - B), (0, 0), (0, 0)))
    grid = (padded_b // TB,)

    consts = _prepare_constants(p)

    def replicated(arr):
        zeros = (0,) * arr.ndim
        return pl.BlockSpec(arr.shape, lambda i, zeros=zeros: zeros)

    in_specs = ([pl.BlockSpec((TB, SEQ_LEN, D_MODEL), lambda i: (i, 0, 0))]
                + [replicated(a) for a in consts])
    out_spec = pl.BlockSpec((TB, N_CLASSES), lambda i: (i, 0))

    flops_per_sample = (
        2 * SEQ_LEN * D_MODEL * 3 * D_MODEL               # fused QKV
        + 2 * 2 * SEQ_LEN * HS * D_MODEL                  # scores + ctx
        + 2 * SEQ_LEN * HS * HS                           # softmax group-sum
        + 2 * SEQ_LEN * D_MODEL * D_MODEL                 # output projection
        + 2 * 2 * SEQ_LEN * D_MODEL * D_FF                # FFN
        + 2 * SEQ_LEN * D_MODEL * SEQ_LEN * N_CLASSES     # classifier partials
        + 2 * SEQ_LEN * N_CLASSES * N_CLASSES)            # classifier collapse
    transc_per_sample = 2 * SEQ_LEN * HS + 2 * SEQ_LEN + N_CLASSES
    const_bytes = sum(int(a.size) * a.dtype.itemsize for a in consts)  # once
    bytes_accessed = (int(x.size) * x.dtype.itemsize
                      + const_bytes
                      + padded_b * N_CLASSES * 4)

    out = pl.pallas_call(
        wibitad_kernel,
        out_shape=jax.ShapeDtypeStruct((padded_b, N_CLASSES), jnp.float32),
        grid=grid,
        in_specs=in_specs,
        out_specs=out_spec,
        compiler_params=pltpu.CompilerParams(
            dimension_semantics=("parallel",),
            vmem_limit_bytes=48 * 1024 * 1024),
        cost_estimate=pl.CostEstimate(
            flops=padded_b * flops_per_sample,
            transcendentals=padded_b * transc_per_sample,
            bytes_accessed=bytes_accessed),
    )(x, *consts)
    return out[:B]


def reference_forward(x, p):
    """Pure-f32 JAX reference of the assumed WiBiTAD forward (verification)."""
    B, S, D = x.shape
    x2 = x.reshape(B * S, D)
    qkv = x2 @ p['w_qkv'] + p['b_qkv']
    q, k, v = qkv[:, :D], qkv[:, D:2 * D], qkv[:, 2 * D:]

    def split_heads(t):
        return t.reshape(B, S, N_HEADS, D_HEAD).transpose(0, 2, 1, 3)

    q, k, v = split_heads(q), split_heads(k), split_heads(v)
    s = jnp.einsum('bhqd,bhkd->bhqk', q, k) / math.sqrt(D_HEAD)
    a = jax.nn.softmax(s, axis=-1)
    ctx = jnp.einsum('bhqk,bhkd->bhqd', a, v)
    ctx = ctx.transpose(0, 2, 1, 3).reshape(B * S, D)
    attn = ctx @ p['w_o'] + p['b_o']

    def ln(z, g, b):
        m = z.mean(-1, keepdims=True)
        var = ((z - m) ** 2).mean(-1, keepdims=True)
        return (z - m) / jnp.sqrt(var + LN_EPS) * g + b

    y = ln(x2 + attn, p['ln1_g'], p['ln1_b'])
    h = jnp.maximum(y @ p['w1'] + p['b1'], 0.0)
    h = h @ p['w2'] + p['b2']
    y = ln(y + h, p['ln2_g'], p['ln2_b'])
    logits = y.reshape(B, S * D) @ p['w_c'] + p['b_c']
    return jax.nn.softmax(logits, axis=-1)


if __name__ == "__main__":
    B = 2
    key = jax.random.PRNGKey(0)
    kx, kp = jax.random.split(key)
    x = jax.random.normal(kx, (B, SEQ_LEN, D_MODEL), jnp.float32)
    params = init_params(kp)

    out = jax.block_until_ready(wibitad_forward(x, params))
    ref = jax.block_until_ready(reference_forward(x, params))

    assert out.shape == (B, N_CLASSES)
    assert bool(jnp.all(jnp.isfinite(out)))
    # softmax rows sum to 1 (final softmax uses an exact divide)
    assert bool(jnp.allclose(jnp.sum(out, axis=-1), 1.0, atol=1e-4))
    # bf16 MXU + approx reciprocal vs f32 reference -> loose tolerance
    assert bool(jnp.max(jnp.abs(out - ref)) < 3e-2)
    print("KERNEL_OK")
</pallas_src>

<mosaic_0001>
module attributes {stable_mosaic.version = 11 : i64} {
  func.func @wibitad_kernel(%arg0: i32, %arg1: memref<8x8x32xf32, #tpu.memory_space<vmem>>, %arg2: memref<32x96xbf16, #tpu.memory_space<vmem>>, %arg3: memref<1x96xf32, #tpu.memory_space<vmem>>, %arg4: memref<32x32xbf16, #tpu.memory_space<vmem>>, %arg5: memref<1x32xf32, #tpu.memory_space<vmem>>, %arg6: memref<1x32xf32, #tpu.memory_space<vmem>>, %arg7: memref<1x32xf32, #tpu.memory_space<vmem>>, %arg8: memref<32x128xbf16, #tpu.memory_space<vmem>>, %arg9: memref<1x128xf32, #tpu.memory_space<vmem>>, %arg10: memref<128x32xbf16, #tpu.memory_space<vmem>>, %arg11: memref<1x32xf32, #tpu.memory_space<vmem>>, %arg12: memref<1x32xf32, #tpu.memory_space<vmem>>, %arg13: memref<1x32xf32, #tpu.memory_space<vmem>>, %arg14: memref<32x48xbf16, #tpu.memory_space<vmem>>, %arg15: memref<1x6xf32, #tpu.memory_space<vmem>>, %arg16: memref<32x32xbf16, #tpu.memory_space<vmem>>, %arg17: memref<32x32xf32, #tpu.memory_space<vmem>>, %arg18: memref<8x48xf32, #tpu.memory_space<vmem>>, %arg19: memref<48x6xf32, #tpu.memory_space<vmem>>, %arg20: memref<8x6xf32, #tpu.memory_space<vmem>>) attributes {dimension_semantics = [#tpu.dimension_semantics<parallel>], iteration_bounds = array<i64: 1>, scalar_prefetch = 0 : i64, scratch_operands = 0 : i64, tpu.core_type = #tpu.core_type<tc>, window_params = [{transform_indices = @transform_0, window_bounds = array<i64: 8, 8, 32>}, {pipeline_mode = #tpu.pipeline_mode<synchronous>, transform_indices = @transform_1, window_bounds = array<i64: 32, 96>}, {pipeline_mode = #tpu.pipeline_mode<synchronous>, transform_indices = @transform_2, window_bounds = array<i64: 1, 96>}, {pipeline_mode = #tpu.pipeline_mode<synchronous>, transform_indices = @transform_3, window_bounds = array<i64: 32, 32>}, {pipeline_mode = #tpu.pipeline_mode<synchronous>, transform_indices = @transform_4, window_bounds = array<i64: 1, 32>}, {pipeline_mode = #tpu.pipeline_mode<synchronous>, transform_indices = @transform_5, window_bounds = array<i64: 1, 32>}, {pipeline_mode = #tpu.pipeline_mode<synchronous>, transform_indices = @transform_6, window_bounds = array<i64: 1, 32>}, {pipeline_mode = #tpu.pipeline_mode<synchronous>, transform_indices = @transform_7, window_bounds = array<i64: 32, 128>}, {pipeline_mode = #tpu.pipeline_mode<synchronous>, transform_indices = @transform_8, window_bounds = array<i64: 1, 128>}, {pipeline_mode = #tpu.pipeline_mode<synchronous>, transform_indices = @transform_9, window_bounds = array<i64: 128, 32>}, {pipeline_mode = #tpu.pipeline_mode<synchronous>, transform_indices = @transform_10, window_bounds = array<i64: 1, 32>}, {pipeline_mode = #tpu.pipeline_mode<synchronous>, transform_indices = @transform_11, window_bounds = array<i64: 1, 32>}, {pipeline_mode = #tpu.pipeline_mode<synchronous>, transform_indices = @transform_12, window_bounds = array<i64: 1, 32>}, {pipeline_mode = #tpu.pipeline_mode<synchronous>, transform_indices = @transform_13, window_bounds = array<i64: 32, 48>}, {pipeline_mode = #tpu.pipeline_mode<synchronous>, transform_indices = @transform_14, window_bounds = array<i64: 1, 6>}, {pipeline_mode = #tpu.pipeline_mode<synchronous>, transform_indices = @transform_15, window_bounds = array<i64: 32, 32>}, {pipeline_mode = #tpu.pipeline_mode<synchronous>, transform_indices = @transform_16, window_bounds = array<i64: 32, 32>}, {pipeline_mode = #tpu.pipeline_mode<synchronous>, transform_indices = @transform_17, window_bounds = array<i64: 8, 48>}, {pipeline_mode = #tpu.pipeline_mode<synchronous>, transform_indices = @transform_18, window_bounds = array<i64: 48, 6>}, {transform_indices = @transform_19, window_bounds = array<i64: 8, 6>}]} {
    %c0 = arith.constant 0 : index
    %c0_0 = arith.constant 0 : index
    %c0_1 = arith.constant 0 : index
    %0 = vector.load %arg1[%c0, %c0_0, %c0_1] : memref<8x8x32xf32, #tpu.memory_space<vmem>>, vector<8x8x32xf32>
    %1 = vector.shape_cast %0 : vector<8x8x32xf32> to vector<64x32xf32>
    %2 = arith.truncf %1 : vector<64x32xf32> to vector<64x32xbf16>
    %c0_2 = arith.constant 0 : index
    %c0_3 = arith.constant 0 : index
    %3 = vector.load %arg2[%c0_2, %c0_3] : memref<32x96xbf16, #tpu.memory_space<vmem>>, vector<32x96xbf16>
    %cst = arith.constant dense<0.000000e+00> : vector<64x96xf32>
    %4 = tpu.matmul %2, %3, %cst {dimension_numbers = #tpu.dot_dimension_numbers<[1], [0], [0], [1], [0, 0, 1, 1], [], []>} : vector<64x32xbf16>, vector<32x96xbf16>, vector<64x96xf32> -> vector<64x96xf32>
    %c0_4 = arith.constant 0 : index
    %c0_5 = arith.constant 0 : index
    %5 = vector.load %arg3[%c0_4, %c0_5] : memref<1x96xf32, #tpu.memory_space<vmem>>, vector<1x96xf32>
    %6 = vector.broadcast %5 : vector<1x96xf32> to vector<64x96xf32>
    %7 = arith.addf %4, %6 : vector<64x96xf32>
    %8 = vector.extract_strided_slice %7 {offsets = [0, 0], sizes = [64, 32], strides = [1, 1]} : vector<64x96xf32> to vector<64x32xf32>
    %9 = vector.shape_cast %8 : vector<64x32xf32> to vector<8x8x32xf32>
    %10 = arith.truncf %9 : vector<8x8x32xf32> to vector<8x8x32xbf16>
    %11 = vector.extract_strided_slice %7 {offsets = [0, 32], sizes = [64, 32], strides = [1, 1]} : vector<64x96xf32> to vector<64x32xf32>
    %12 = vector.shape_cast %11 : vector<64x32xf32> to vector<8x8x32xf32>
    %13 = arith.truncf %12 : vector<8x8x32xf32> to vector<8x8x32xbf16>
    %14 = vector.extract_strided_slice %7 {offsets = [0, 64], sizes = [64, 32], strides = [1, 1]} : vector<64x96xf32> to vector<64x32xf32>
    %15 = vector.shape_cast %14 : vector<64x32xf32> to vector<8x8x32xf32>
    %16 = arith.truncf %15 : vector<8x8x32xf32> to vector<8x8x32xbf16>
    %c0_6 = arith.constant 0 : index
    %c0_7 = arith.constant 0 : index
    %17 = vector.load %arg16[%c0_6, %c0_7] : memref<32x32xbf16, #tpu.memory_space<vmem>>, vector<32x32xbf16>
    %18 = tpu.concatenate %13, %13, %13, %13 in 1 : vector<8x8x32xbf16>, vector<8x8x32xbf16>, vector<8x8x32xbf16>, vector<8x8x32xbf16> -> vector<8x32x32xbf16>
    %19 = vector.shape_cast %17 : vector<32x32xbf16> to vector<1x32x32xbf16>
    %20 = vector.broadcast %19 : vector<1x32x32xbf16> to vector<8x32x32xbf16>
    %21 = arith.mulf %18, %20 : vector<8x32x32xbf16>
    %22 = tpu.concatenate %16, %16, %16, %16 in 1 : vector<8x8x32xbf16>, vector<8x8x32xbf16>, vector<8x8x32xbf16>, vector<8x8x32xbf16> -> vector<8x32x32xbf16>
    %23 = vector.shape_cast %17 : vector<32x32xbf16> to vector<1x32x32xbf16>
    %24 = vector.broadcast %23 : vector<1x32x32xbf16> to vector<8x32x32xbf16>
    %25 = arith.mulf %22, %24 : vector<8x32x32xbf16>
    "tpu.trace_start"() <{level = 10 : i32, message = "bqd,bkd->bqk"}> : () -> ()
    %cst_8 = arith.constant dense<0.000000e+00> : vector<8x8x32xf32>
    %26 = tpu.matmul %10, %21, %cst_8 {dimension_numbers = #tpu.dot_dimension_numbers<[2], [2], [1], [1], [0, 0, 0, 1, 1, 1], [0], [0]>} : vector<8x8x32xbf16>, vector<8x32x32xbf16>, vector<8x8x32xf32> -> vector<8x8x32xf32>
    "tpu.trace_stop"() : () -> ()
    %cst_9 = arith.constant 0.353553385 : f32
    %27 = vector.broadcast %cst_9 : f32 to vector<8x8x32xf32>
    %28 = arith.mulf %26, %27 : vector<8x8x32xf32>
    %cst_10 = arith.constant dense<0xFF800000> : vector<8x8xf32>
    %29 = vector.multi_reduction <maximumf>, %28, %cst_10 [2] : vector<8x8x32xf32> to vector<8x8xf32>
    %30 = vector.shape_cast %29 : vector<8x8xf32> to vector<8x8x1xf32>
    %31 = vector.broadcast %30 : vector<8x8x1xf32> to vector<8x8x32xf32>
    %32 = arith.subf %28, %31 : vector<8x8x32xf32>
    %33 = math.exp %32 : vector<8x8x32xf32>
    %34 = vector.shape_cast %33 : vector<8x8x32xf32> to vector<64x32xf32>
    %c0_11 = arith.constant 0 : index
    %c0_12 = arith.constant 0 : index
    %35 = vector.load %arg17[%c0_11, %c0_12] : memref<32x32xf32, #tpu.memory_space<vmem>>, vector<32x32xf32>
    %cst_13 = arith.constant dense<0.000000e+00> : vector<64x32xf32>
    %36 = tpu.matmul %34, %35, %cst_13 {dimension_numbers = #tpu.dot_dimension_numbers<[1], [0], [0], [1], [0, 0, 1, 1], [], []>} : vector<64x32xf32>, vector<32x32xf32>, vector<64x32xf32> -> vector<64x32xf32>
    %37 = vector.shape_cast %36 : vector<64x32xf32> to vector<8x8x32xf32>
    %38 = tpu.reciprocal %37 {approx = true} : vector<8x8x32xf32> -> vector<8x8x32xf32>
    %39 = arith.mulf %33, %38 : vector<8x8x32xf32>
    %40 = arith.truncf %39 : vector<8x8x32xf32> to vector<8x8x32xbf16>
    "tpu.trace_start"() <{level = 10 : i32, message = "bqk,bkd->bqd"}> : () -> ()
    %cst_14 = arith.constant dense<0.000000e+00> : vector<8x8x32xf32>
    %41 = tpu.matmul %40, %25, %cst_14 {dimension_numbers = #tpu.dot_dimension_numbers<[2], [1], [1], [2], [0, 0, 0, 1, 1, 2], [0], [0]>} : vector<8x8x32xbf16>, vector<8x32x32xbf16>, vector<8x8x32xf32> -> vector<8x8x32xf32>
    "tpu.trace_stop"() : () -> ()
    %42 = vector.shape_cast %41 : vector<8x8x32xf32> to vector<64x32xf32>
    %43 = arith.truncf %42 : vector<64x32xf32> to vector<64x32xbf16>
    %c0_15 = arith.constant 0 : index
    %c0_16 = arith.constant 0 : index
    %44 = vector.load %arg4[%c0_15, %c0_16] : memref<32x32xbf16, #tpu.memory_space<vmem>>, vector<32x32xbf16>
    %cst_17 = arith.constant dense<0.000000e+00> : vector<64x32xf32>
    %45 = tpu.matmul %43, %44, %cst_17 {dimension_numbers = #tpu.dot_dimension_numbers<[1], [0], [0], [1], [0, 0, 1, 1], [], []>} : vector<64x32xbf16>, vector<32x32xbf16>, vector<64x32xf32> -> vector<64x32xf32>
    %c0_18 = arith.constant 0 : index
    %c0_19 = arith.constant 0 : index
    %46 = vector.load %arg5[%c0_18, %c0_19] : memref<1x32xf32, #tpu.memory_space<vmem>>, vector<1x32xf32>
    %47 = vector.broadcast %46 : vector<1x32xf32> to vector<64x32xf32>
    %48 = arith.addf %45, %47 : vector<64x32xf32>
    %49 = arith.addf %1, %48 : vector<64x32xf32>
    %c0_20 = arith.constant 0 : index
    %c0_21 = arith.constant 0 : index
    %50 = vector.load %arg6[%c0_20, %c0_21] : memref<1x32xf32, #tpu.memory_space<vmem>>, vector<1x32xf32>
    %c0_22 = arith.constant 0 : index
    %c0_23 = arith.constant 0 : index
    %51 = vector.load %arg7[%c0_22, %c0_23] : memref<1x32xf32, #tpu.memory_space<vmem>>, vector<1x32xf32>
    %cst_24 = arith.constant dense<0.000000e+00> : vector<64xf32>
    %52 = vector.multi_reduction <add>, %49, %cst_24 [1] : vector<64x32xf32> to vector<64xf32>
    %53 = vector.shape_cast %52 : vector<64xf32> to vector<64x1xf32>
    %cst_25 = arith.constant 3.200000e+01 : f32
    %54 = vector.broadcast %cst_25 : f32 to vector<64x1xf32>
    %55 = arith.divf %53, %54 : vector<64x1xf32>
    %56 = vector.broadcast %55 : vector<64x1xf32> to vector<64x32xf32>
    %57 = arith.subf %49, %56 : vector<64x32xf32>
    %58 = arith.mulf %57, %57 : vector<64x32xf32>
    %cst_26 = arith.constant dense<0.000000e+00> : vector<64xf32>
    %59 = vector.multi_reduction <add>, %58, %cst_26 [1] : vector<64x32xf32> to vector<64xf32>
    %60 = vector.shape_cast %59 : vector<64xf32> to vector<64x1xf32>
    %cst_27 = arith.constant 3.200000e+01 : f32
    %61 = vector.broadcast %cst_27 : f32 to vector<64x1xf32>
    %62 = arith.divf %60, %61 : vector<64x1xf32>
    %63 = vector.broadcast %55 : vector<64x1xf32> to vector<64x32xf32>
    %64 = arith.subf %49, %63 : vector<64x32xf32>
    %cst_28 = arith.constant 9.99999974E-6 : f32
    %65 = vector.broadcast %cst_28 : f32 to vector<64x1xf32>
    %66 = arith.addf %62, %65 : vector<64x1xf32>
    %67 = math.rsqrt %66 : vector<64x1xf32>
    %68 = vector.broadcast %67 : vector<64x1xf32> to vector<64x32xf32>
    %69 = arith.mulf %64, %68 : vector<64x32xf32>
    %70 = vector.broadcast %50 : vector<1x32xf32> to vector<64x32xf32>
    %71 = arith.mulf %69, %70 : vector<64x32xf32>
    %72 = vector.broadcast %51 : vector<1x32xf32> to vector<64x32xf32>
    %73 = arith.addf %71, %72 : vector<64x32xf32>
    %74 = arith.truncf %73 : vector<64x32xf32> to vector<64x32xbf16>
    %c0_29 = arith.constant 0 : index
    %c0_30 = arith.constant 0 : index
    %75 = vector.load %arg8[%c0_29, %c0_30] : memref<32x128xbf16, #tpu.memory_space<vmem>>, vector<32x128xbf16>
    %cst_31 = arith.constant dense<0.000000e+00> : vector<64x128xf32>
    %76 = tpu.matmul %74, %75, %cst_31 {dimension_numbers = #tpu.dot_dimension_numbers<[1], [0], [0], [1], [0, 0, 1, 1], [], []>} : vector<64x32xbf16>, vector<32x128xbf16>, vector<64x128xf32> -> vector<64x128xf32>
    %c0_32 = arith.constant 0 : index
    %c0_33 = arith.constant 0 : index
    %77 = vector.load %arg9[%c0_32, %c0_33] : memref<1x128xf32, #tpu.memory_space<vmem>>, vector<1x128xf32>
    %78 = vector.broadcast %77 : vector<1x128xf32> to vector<64x128xf32>
    %79 = arith.addf %76, %78 : vector<64x128xf32>
    %cst_34 = arith.constant 0.000000e+00 : f32
    %80 = vector.broadcast %cst_34 : f32 to vector<64x128xf32>
    %81 = arith.maximumf %79, %80 : vector<64x128xf32>
    %82 = arith.truncf %81 : vector<64x128xf32> to vector<64x128xbf16>
    %c0_35 = arith.constant 0 : index
    %c0_36 = arith.constant 0 : index
    %83 = vector.load %arg10[%c0_35, %c0_36] : memref<128x32xbf16, #tpu.memory_space<vmem>>, vector<128x32xbf16>
    %cst_37 = arith.constant dense<0.000000e+00> : vector<64x32xf32>
    %84 = tpu.matmul %82, %83, %cst_37 {dimension_numbers = #tpu.dot_dimension_numbers<[1], [0], [0], [1], [0, 0, 1, 1], [], []>} : vector<64x128xbf16>, vector<128x32xbf16>, vector<64x32xf32> -> vector<64x32xf32>
    %c0_38 = arith.constant 0 : index
    %c0_39 = arith.constant 0 : index
    %85 = vector.load %arg11[%c0_38, %c0_39] : memref<1x32xf32, #tpu.memory_space<vmem>>, vector<1x32xf32>
    %86 = vector.broadcast %85 : vector<1x32xf32> to vector<64x32xf32>
    %87 = arith.addf %84, %86 : vector<64x32xf32>
    %88 = arith.addf %73, %87 : vector<64x32xf32>
    %c0_40 = arith.constant 0 : index
    %c0_41 = arith.constant 0 : index
    %89 = vector.load %arg12[%c0_40, %c0_41] : memref<1x32xf32, #tpu.memory_space<vmem>>, vector<1x32xf32>
    %c0_42 = arith.constant 0 : index
    %c0_43 = arith.constant 0 : index
    %90 = vector.load %arg13[%c0_42, %c0_43] : memref<1x32xf32, #tpu.memory_space<vmem>>, vector<1x32xf32>
    %cst_44 = arith.constant dense<0.000000e+00> : vector<64xf32>
    %91 = vector.multi_reduction <add>, %88, %cst_44 [1] : vector<64x32xf32> to vector<64xf32>
    %92 = vector.shape_cast %91 : vector<64xf32> to vector<64x1xf32>
    %cst_45 = arith.constant 3.200000e+01 : f32
    %93 = vector.broadcast %cst_45 : f32 to vector<64x1xf32>
    %94 = arith.divf %92, %93 : vector<64x1xf32>
    %95 = vector.broadcast %94 : vector<64x1xf32> to vector<64x32xf32>
    %96 = arith.subf %88, %95 : vector<64x32xf32>
    %97 = arith.mulf %96, %96 : vector<64x32xf32>
    %cst_46 = arith.constant dense<0.000000e+00> : vector<64xf32>
    %98 = vector.multi_reduction <add>, %97, %cst_46 [1] : vector<64x32xf32> to vector<64xf32>
    %99 = vector.shape_cast %98 : vector<64xf32> to vector<64x1xf32>
    %cst_47 = arith.constant 3.200000e+01 : f32
    %100 = vector.broadcast %cst_47 : f32 to vector<64x1xf32>
    %101 = arith.divf %99, %100 : vector<64x1xf32>
    %102 = vector.broadcast %94 : vector<64x1xf32> to vector<64x32xf32>
    %103 = arith.subf %88, %102 : vector<64x32xf32>
    %cst_48 = arith.constant 9.99999974E-6 : f32
    %104 = vector.broadcast %cst_48 : f32 to vector<64x1xf32>
    %105 = arith.addf %101, %104 : vector<64x1xf32>
    %106 = math.rsqrt %105 : vector<64x1xf32>
    %107 = vector.broadcast %106 : vector<64x1xf32> to vector<64x32xf32>
    %108 = arith.mulf %103, %107 : vector<64x32xf32>
    %109 = vector.broadcast %89 : vector<1x32xf32> to vector<64x32xf32>
    %110 = arith.mulf %108, %109 : vector<64x32xf32>
    %111 = vector.broadcast %90 : vector<1x32xf32> to vector<64x32xf32>
    %112 = arith.addf %110, %111 : vector<64x32xf32>
    %113 = arith.truncf %112 : vector<64x32xf32> to vector<64x32xbf16>
    %c0_49 = arith.constant 0 : index
    %c0_50 = arith.constant 0 : index
    %114 = vector.load %arg14[%c0_49, %c0_50] : memref<32x48xbf16, #tpu.memory_space<vmem>>, vector<32x48xbf16>
    %cst_51 = arith.constant dense<0.000000e+00> : vector<64x48xf32>
    %115 = tpu.matmul %113, %114, %cst_51 {dimension_numbers = #tpu.dot_dimension_numbers<[1], [0], [0], [1], [0, 0, 1, 1], [], []>} : vector<64x32xbf16>, vector<32x48xbf16>, vector<64x48xf32> -> vector<64x48xf32>
    %116 = vector.shape_cast %115 : vector<64x48xf32> to vector<8x8x48xf32>
    %c0_52 = arith.constant 0 : index
    %c0_53 = arith.constant 0 : index
    %117 = vector.load %arg18[%c0_52, %c0_53] : memref<8x48xf32, #tpu.memory_space<vmem>>, vector<8x48xf32>
    %118 = vector.shape_cast %117 : vector<8x48xf32> to vector<1x8x48xf32>
    %119 = vector.broadcast %118 : vector<1x8x48xf32> to vector<8x8x48xf32>
    %120 = arith.mulf %116, %119 : vector<8x8x48xf32>
    %cst_54 = arith.constant dense<0.000000e+00> : vector<8x48xf32>
    %121 = vector.multi_reduction <add>, %120, %cst_54 [1] : vector<8x8x48xf32> to vector<8x48xf32>
    %c0_55 = arith.constant 0 : index
    %c0_56 = arith.constant 0 : index
    %122 = vector.load %arg19[%c0_55, %c0_56] : memref<48x6xf32, #tpu.memory_space<vmem>>, vector<48x6xf32>
    %cst_57 = arith.constant dense<0.000000e+00> : vector<8x6xf32>
    %123 = tpu.matmul %121, %122, %cst_57 {dimension_numbers = #tpu.dot_dimension_numbers<[1], [0], [0], [1], [0, 0, 1, 1], [], []>} : vector<8x48xf32>, vector<48x6xf32>, vector<8x6xf32> -> vector<8x6xf32>
    %c0_58 = arith.constant 0 : index
    %c0_59 = arith.constant 0 : index
    %124 = vector.load %arg15[%c0_58, %c0_59] : memref<1x6xf32, #tpu.memory_space<vmem>>, vector<1x6xf32>
    %125 = vector.broadcast %124 : vector<1x6xf32> to vector<8x6xf32>
    %126 = arith.addf %123, %125 : vector<8x6xf32>
    %cst_60 = arith.constant dense<0xFF800000> : vector<8xf32>
    %127 = vector.multi_reduction <maximumf>, %126, %cst_60 [1] : vector<8x6xf32> to vector<8xf32>
    %128 = vector.shape_cast %127 : vector<8xf32> to vector<8x1xf32>
    %129 = vector.broadcast %128 : vector<8x1xf32> to vector<8x6xf32>
    %130 = arith.subf %126, %129 : vector<8x6xf32>
    %131 = math.exp %130 : vector<8x6xf32>
    %cst_61 = arith.constant dense<0.000000e+00> : vector<8xf32>
    %132 = vector.multi_reduction <add>, %131, %cst_61 [1] : vector<8x6xf32> to vector<8xf32>
    %133 = vector.shape_cast %132 : vector<8xf32> to vector<8x1xf32>
    %134 = vector.broadcast %133 : vector<8x1xf32> to vector<8x6xf32>
    %135 = arith.divf %131, %134 : vector<8x6xf32>
    %c0_62 = arith.constant 0 : index
    %c0_63 = arith.constant 0 : index
    %136 = vector.load %arg20[%c0_62, %c0_63] : memref<8x6xf32, #tpu.memory_space<vmem>>, vector<8x6xf32>
    tpu.vector_store %arg20[%c0_62, %c0_63], %135 {strides = array<i32>} : memref<8x6xf32, #tpu.memory_space<vmem>>, vector<8x6xf32>,
    return
  }
  func.func @transform_0(%arg0: i32) -> (i32, i32, i32) {
    %c0_i32 = arith.constant 0 : i32
    %c0_i32_0 = arith.constant 0 : i32
    %c0_i32_1 = arith.constant 0 : i32
    return %arg0, %c0_i32, %c0_i32_0 : i32, i32, i32
  }
  func.func @transform_1(%arg0: i32) -> (i32, i32) {
    %c0_i32 = arith.constant 0 : i32
    %c0_i32_0 = arith.constant 0 : i32
    %c0_i32_1 = arith.constant 0 : i32
    return %c0_i32, %c0_i32_0 : i32, i32
  }
  func.func @transform_2(%arg0: i32) -> (i32, i32) {
    %c0_i32 = arith.constant 0 : i32
    %c0_i32_0 = arith.constant 0 : i32
    %c0_i32_1 = arith.constant 0 : i32
    return %c0_i32, %c0_i32_0 : i32, i32
  }
  func.func @transform_3(%arg0: i32) -> (i32, i32) {
    %c0_i32 = arith.constant 0 : i32
    %c0_i32_0 = arith.constant 0 : i32
    %c0_i32_1 = arith.constant 0 : i32
    return %c0_i32, %c0_i32_0 : i32, i32
  }
  func.func @transform_4(%arg0: i32) -> (i32, i32) {
    %c0_i32 = arith.constant 0 : i32
    %c0_i32_0 = arith.constant 0 : i32
    %c0_i32_1 = arith.constant 0 : i32
    return %c0_i32, %c0_i32_0 : i32, i32
  }
  func.func @transform_5(%arg0: i32) -> (i32, i32) {
    %c0_i32 = arith.constant 0 : i32
    %c0_i32_0 = arith.constant 0 : i32
    %c0_i32_1 = arith.constant 0 : i32
    return %c0_i32, %c0_i32_0 : i32, i32
  }
  func.func @transform_6(%arg0: i32) -> (i32, i32) {
    %c0_i32 = arith.constant 0 : i32
    %c0_i32_0 = arith.constant 0 : i32
    %c0_i32_1 = arith.constant 0 : i32
    return %c0_i32, %c0_i32_0 : i32, i32
  }
  func.func @transform_7(%arg0: i32) -> (i32, i32) {
    %c0_i32 = arith.constant 0 : i32
    %c0_i32_0 = arith.constant 0 : i32
    %c0_i32_1 = arith.constant 0 : i32
    return %c0_i32, %c0_i32_0 : i32, i32
  }
  func.func @transform_8(%arg0: i32) -> (i32, i32) {
    %c0_i32 = arith.constant 0 : i32
    %c0_i32_0 = arith.constant 0 : i32
    %c0_i32_1 = arith.constant 0 : i32
    return %c0_i32, %c0_i32_0 : i32, i32
  }
  func.func @transform_9(%arg0: i32) -> (i32, i32) {
    %c0_i32 = arith.constant 0 : i32
    %c0_i32_0 = arith.constant 0 : i32
    %c0_i32_1 = arith.constant 0 : i32
    return %c0_i32, %c0_i32_0 : i32, i32
  }
  func.func @transform_10(%arg0: i32) -> (i32, i32) {
    %c0_i32 = arith.constant 0 : i32
    %c0_i32_0 = arith.constant 0 : i32
    %c0_i32_1 = arith.constant 0 : i32
    return %c0_i32, %c0_i32_0 : i32, i32
  }
  func.func @transform_11(%arg0: i32) -> (i32, i32) {
    %c0_i32 = arith.constant 0 : i32
    %c0_i32_0 = arith.constant 0 : i32
    %c0_i32_1 = arith.constant 0 : i32
    return %c0_i32, %c0_i32_0 : i32, i32
  }
  func.func @transform_12(%arg0: i32) -> (i32, i32) {
    %c0_i32 = arith.constant 0 : i32
    %c0_i32_0 = arith.constant 0 : i32
    %c0_i32_1 = arith.constant 0 : i32
    return %c0_i32, %c0_i32_0 : i32, i32
  }
  func.func @transform_13(%arg0: i32) -> (i32, i32) {
    %c0_i32 = arith.constant 0 : i32
    %c0_i32_0 = arith.constant 0 : i32
    %c0_i32_1 = arith.constant 0 : i32
    return %c0_i32, %c0_i32_0 : i32, i32
  }
  func.func @transform_14(%arg0: i32) -> (i32, i32) {
    %c0_i32 = arith.constant 0 : i32
    %c0_i32_0 = arith.constant 0 : i32
    %c0_i32_1 = arith.constant 0 : i32
    return %c0_i32, %c0_i32_0 : i32, i32
  }
  func.func @transform_15(%arg0: i32) -> (i32, i32) {
    %c0_i32 = arith.constant 0 : i32
    %c0_i32_0 = arith.constant 0 : i32
    %c0_i32_1 = arith.constant 0 : i32
    return %c0_i32, %c0_i32_0 : i32, i32
  }
  func.func @transform_16(%arg0: i32) -> (i32, i32) {
    %c0_i32 = arith.constant 0 : i32
    %c0_i32_0 = arith.constant 0 : i32
    %c0_i32_1 = arith.constant 0 : i32
    return %c0_i32, %c0_i32_0 : i32, i32
  }
  func.func @transform_17(%arg0: i32) -> (i32, i32) {
    %c0_i32 = arith.constant 0 : i32
    %c0_i32_0 = arith.constant 0 : i32
    %c0_i32_1 = arith.constant 0 : i32
    return %c0_i32, %c0_i32_0 : i32, i32
  }
  func.func @transform_18(%arg0: i32) -> (i32, i32) {
    %c0_i32 = arith.constant 0 : i32
    %c0_i32_0 = arith.constant 0 : i32
    %c0_i32_1 = arith.constant 0 : i32
    return %c0_i32, %c0_i32_0 : i32, i32
  }
  func.func @transform_19(%arg0: i32) -> (i32, i32) {
    %c0_i32 = arith.constant 0 : i32
    %c0_i32_0 = arith.constant 0 : i32
    return %arg0, %c0_i32 : i32, i32
  }
}

</mosaic_0001>

<llo_original>
// kernel: tpu_custom_call.1
$region0: #{tpu_custom_call.1}
  #allocation0 [shape = 'u32[]', space=smem, size = 0x4, offset = 0x4, fixed_abs, tag = 'smem constant byte address 0x4 - core index']
  #allocation1 [shape = 'u32[72,128]{1,0:T(1,128)}', space=vmem, size = 0x9000, scoped, tag = 'internal scratch']
  %s0 = inlined_call_operand.vmem [shape: f32[8,8,32], index: 0, kind: input, shape index: {}]
  %s1 = inlined_call_operand.vmem [shape: bf16[32,96], index: 1, kind: input, shape index: {}]
  %s2 = inlined_call_operand.hbm [shape: f32[1,96], index: 2, kind: input, shape index: {}]
  %s3 = inlined_call_operand.vmem [shape: bf16[32,32], index: 3, kind: input, shape index: {}]
  %s4 = inlined_call_operand.hbm [shape: f32[1,32], index: 4, kind: input, shape index: {}]
  %s5 = inlined_call_operand.hbm [shape: f32[1,32], index: 5, kind: input, shape index: {}]
  %s6 = inlined_call_operand.hbm [shape: f32[1,32], index: 6, kind: input, shape index: {}]
  %s7 = inlined_call_operand.hbm [shape: bf16[32,128], index: 7, kind: input, shape index: {}]
  %s8 = inlined_call_operand.hbm [shape: f32[1,128], index: 8, kind: input, shape index: {}]
  %s9 = inlined_call_operand.vmem [shape: bf16[128,32], index: 9, kind: input, shape index: {}]
  %s10 = inlined_call_operand.hbm [shape: f32[1,32], index: 10, kind: input, shape index: {}]
  %s11 = inlined_call_operand.hbm [shape: f32[1,32], index: 11, kind: input, shape index: {}]
  %s12 = inlined_call_operand.hbm [shape: f32[1,32], index: 12, kind: input, shape index: {}]
  %s13 = inlined_call_operand.vmem [shape: bf16[32,48], index: 13, kind: input, shape index: {}]
  %s14 = inlined_call_operand.hbm [shape: f32[1,6], index: 14, kind: input, shape index: {}]
  %s15 = inlined_call_operand.hbm [shape: bf16[32,32], index: 15, kind: input, shape index: {}]
  %s16 = inlined_call_operand.vmem [shape: f32[32,32], index: 16, kind: input, shape index: {}]
  %s17 = inlined_call_operand.hbm [shape: f32[8,48], index: 17, kind: input, shape index: {}]
  %s18 = inlined_call_operand.vmem [shape: f32[48,6], index: 18, kind: input, shape index: {}]
  %s19 = inlined_call_operand.hbm [shape: f32[8,6], index: 19, kind: output, shape index: {}]
  %s20 = sld [smem:[#allocation0]]
  $region134: #{tpu_custom_call.1} parent=0
    _
  %s22 = ssub.s32 1, %s20
  %s23 = scalar_select 0, %s22, %s20
  $region1: #{tpu_custom_call.1} parent=0
    #allocation2 [shape = 'u8[512]{0}', space=vmem, size = 0x400, scoped, tag = 'input window, operand 2, single buffered']
    #allocation3 [shape = 's32[1]{0}', space=sflag, size = 0x4, scoped, tag = 'scoped memory for tpu_custom_call.1']
    #allocation4 [shape = 's32[1]{0}', space=sflag, size = 0x4, scoped, tag = 'scoped memory for tpu_custom_call.1']
    #allocation5 [shape = 'u8[512]{0}', space=vmem, size = 0x400, scoped, tag = 'input window, operand 4, single buffered']
    #allocation6 [shape = 's32[1]{0}', space=sflag, size = 0x4, scoped, tag = 'scoped memory for tpu_custom_call.1']
    #allocation7 [shape = 'u8[512]{0}', space=vmem, size = 0x400, scoped, tag = 'input window, operand 5, single buffered']
    #allocation8 [shape = 'u8[512]{0}', space=vmem, size = 0x400, scoped, tag = 'input window, operand 6, single buffered']
    #allocation9 [shape = 's32[1]{0}', space=sflag, size = 0x4, scoped, tag = 'scoped memory for tpu_custom_call.1']
    #allocation10 [shape = 'u8[8192]{0}', space=vmem, size = 0x2000, scoped, tag = 'input window, operand 7, single buffered']
    #allocation11 [shape = 'u8[512]{0}', space=vmem, size = 0x400, scoped, tag = 'input window, operand 8, single buffered']
    #allocation12 [shape = 's32[1]{0}', space=sflag, size = 0x4, scoped, tag = 'scoped memory for tpu_custom_call.1']
    #allocation13 [shape = 'u8[512]{0}', space=vmem, size = 0x400, scoped, tag = 'input window, operand 10, single buffered']
    #allocation14 [shape = 'u8[512]{0}', space=vmem, size = 0x400, scoped, tag = 'input window, operand 11, single buffered']
    #allocation15 [shape = 's32[1]{0}', space=sflag, size = 0x4, scoped, tag = 'scoped memory for tpu_custom_call.1']
    #allocation16 [shape = 'u8[512]{0}', space=vmem, size = 0x400, scoped, tag = 'input window, operand 12, single buffered']
    #allocation17 [shape = 'u8[512]{0}', space=vmem, size = 0x400, scoped, tag = 'input window, operand 14, single buffered']
    #allocation18 [shape = 's32[1]{0}', space=sflag, size = 0x4, scoped, tag = 'scoped memory for tpu_custom_call.1']
    #allocation19 [shape = 'u8[8192]{0}', space=vmem, size = 0x2000, scoped, tag = 'input window, operand 15, single buffered']
    #allocation20 [shape = 'u8[4096]{0}', space=vmem, size = 0x1000, scoped, tag = 'input window, operand 17, single buffered']
    #allocation21 [shape = 's32[1]{0}', space=sflag, size = 0x4, scoped, tag = 'scoped memory for tpu_custom_call.1']
    #allocation22 [shape = 'u8[4096]{0}', space=vmem, size = 0x1000, scoped, tag = 'output window, operand 0, single buffered']
    %24 = vsyncpa [#allocation3], 0
    %25 = vsyncpa [#allocation6], 0
    %26 = vsyncpa [#allocation9], 0
    %27 = vsyncpa [#allocation12], 0
    %28 = vsyncpa [#allocation15], 0
    %29 = vsyncpa [#allocation18], 0
    %30 = vsyncpa [#allocation21], 0
    %31 = vsyncpa [#allocation4], 0
    // Predicated region
    $region2: #{tpu_custom_call.1} parent=1 // pred_check
      _
    $region3: #{tpu_custom_call.1} parent=1 // pred_check_branch
      %33 = sbr.rel (0) target = $region5
    $region4: #{tpu_custom_call.1} parent=1 // pred_region
      _
    $region5: #{tpu_custom_call.1} parent=1 // pred_fallthru
      _
    // Predicated region
    $region6: #{tpu_custom_call.1} parent=1 // pred_check
      _
    $region7: #{tpu_custom_call.1} parent=1 // pred_check_branch
      %35 = sbr.rel (0) target = $region9
    $region8: #{tpu_custom_call.1} parent=1 // pred_region
      _
    $region9: #{tpu_custom_call.1} parent=1 // pred_fallthru
      _
    // Predicated region
    $region10: #{tpu_custom_call.1} parent=1 // pred_check
      _
    $region11: #{tpu_custom_call.1} parent=1 // pred_check_branch
      %37 = sbr.rel (0) target = $region13
    $region12: #{tpu_custom_call.1} parent=1 // pred_region
      %39 = vsyncadd [#allocation3], 0
      %s41 = sshll.u32 %s2, 4
      %s42 = int_to_ptr.hbm [resolvable:$true] %s41
      %s43 = sshll.u32 [#allocation2], 4
      %s44 = int_to_ptr.vmem [resolvable:$true] %s43
      %46 = dma.hbm_to_vmem [thread:$0]  %s42, 16, %s44, [#allocation3]
    $region13: #{tpu_custom_call.1} parent=1 // pred_fallthru
      _
    // Predicated region
    $region14: #{tpu_custom_call.1} parent=1 // pred_check
      _
    $region15: #{tpu_custom_call.1} parent=1 // pred_check_branch
      %48 = sbr.rel (0) target = $region17
    $region16: #{tpu_custom_call.1} parent=1 // pred_region
      _
    $region17: #{tpu_custom_call.1} parent=1 // pred_fallthru
      _
    // Predicated region
    $region18: #{tpu_custom_call.1} parent=1 // pred_check
      _
    $region19: #{tpu_custom_call.1} parent=1 // pred_check_branch
      %50 = sbr.rel (0) target = $region21
    $region20: #{tpu_custom_call.1} parent=1 // pred_region
      %52 = vsyncadd [#allocation6], 0
      %s54 = sshll.u32 %s4, 4
      %s55 = int_to_ptr.hbm [resolvable:$true] %s54
      %s56 = sshll.u32 [#allocation5], 4
      %s57 = int_to_ptr.vmem [resolvable:$true] %s56
      %59 = dma.hbm_to_vmem [thread:$0]  %s55, 16, %s57, [#allocation6]
    $region21: #{tpu_custom_call.1} parent=1 // pred_fallthru
      _
    // Predicated region
    $region22: #{tpu_custom_call.1} parent=1 // pred_check
      _
    $region23: #{tpu_custom_call.1} parent=1 // pred_check_branch
      %61 = sbr.rel (0) target = $region25
    $region24: #{tpu_custom_call.1} parent=1 // pred_region
      %63 = vsyncadd [#allocation6], 0
      %s65 = sshll.u32 %s5, 4
      %s66 = int_to_ptr.hbm [resolvable:$true] %s65
      %s67 = sshll.u32 [#allocation7], 4
      %s68 = int_to_ptr.vmem [resolvable:$true] %s67
      %70 = dma.hbm_to_vmem [thread:$0]  %s66, 16, %s68, [#allocation6]
    $region25: #{tpu_custom_call.1} parent=1 // pred_fallthru
      _
    // Predicated region
    $region26: #{tpu_custom_call.1} parent=1 // pred_check
      _
    $region27: #{tpu_custom_call.1} parent=1 // pred_check_branch
      %72 = sbr.rel (0) target = $region29
    $region28: #{tpu_custom_call.1} parent=1 // pred_region
      %74 = vsyncadd [#allocation9], 0
      %s76 = sshll.u32 %s6, 4
      %s77 = int_to_ptr.hbm [resolvable:$true] %s76
      %s78 = sshll.u32 [#allocation8], 4
      %s79 = int_to_ptr.vmem [resolvable:$true] %s78
      %81 = dma.hbm_to_vmem [thread:$0]  %s77, 16, %s79, [#allocation9]
    $region29: #{tpu_custom_call.1} parent=1 // pred_fallthru
      _
    // Predicated region
    $region30: #{tpu_custom_call.1} parent=1 // pred_check
      _
    $region31: #{tpu_custom_call.1} parent=1 // pred_check_branch
      %83 = sbr.rel (0) target = $region33
    $region32: #{tpu_custom_call.1} parent=1 // pred_region
      %85 = vsyncadd [#allocation9], 0
      %s86 = sshll.u32 %s7, 4
      %s87 = int_to_ptr.hbm [resolvable:$true] %s86
      %s88 = sshll.u32 [#allocation10], 4
      %s89 = int_to_ptr.vmem [resolvable:$true] %s88
      %94 = dma.hbm_to_vmem [thread:$0]  %s87, 256, %s89, [#allocation9], 64, 64, 4
    $region33: #{tpu_custom_call.1} parent=1 // pred_fallthru
      _
    // Predicated region
    $region34: #{tpu_custom_call.1} parent=1 // pred_check
      _
    $region35: #{tpu_custom_call.1} parent=1 // pred_check_branch
      %96 = sbr.rel (0) target = $region37
    $region36: #{tpu_custom_call.1} parent=1 // pred_region
      %98 = vsyncadd [#allocation12], 0
      %s100 = sshll.u32 %s8, 4
      %s101 = int_to_ptr.hbm [resolvable:$true] %s100
      %s102 = sshll.u32 [#allocation11], 4
      %s103 = int_to_ptr.vmem [resolvable:$true] %s102
      %105 = dma.hbm_to_vmem [thread:$0]  %s101, 16, %s103, [#allocation12]
    $region37: #{tpu_custom_call.1} parent=1 // pred_fallthru
      _
    // Predicated region
    $region38: #{tpu_custom_call.1} parent=1 // pred_check
      _
    $region39: #{tpu_custom_call.1} parent=1 // pred_check_branch
      %107 = sbr.rel (0) target = $region41
    $region40: #{tpu_custom_call.1} parent=1 // pred_region
      _
    $region41: #{tpu_custom_call.1} parent=1 // pred_fallthru
      _
    // Predicated region
    $region42: #{tpu_custom_call.1} parent=1 // pred_check
      _
    $region43: #{tpu_custom_call.1} parent=1 // pred_check_branch
      %109 = sbr.rel (0) target = $region45
    $region44: #{tpu_custom_call.1} parent=1 // pred_region
      %111 = vsyncadd [#allocation12], 0
      %s113 = sshll.u32 %s10, 4
      %s114 = int_to_ptr.hbm [resolvable:$true] %s113
      %s115 = sshll.u32 [#allocation13], 4
      %s116 = int_to_ptr.vmem [resolvable:$true] %s115
      %118 = dma.hbm_to_vmem [thread:$0]  %s114, 16, %s116, [#allocation12]
    $region45: #{tpu_custom_call.1} parent=1 // pred_fallthru
      _
    // Predicated region
    $region46: #{tpu_custom_call.1} parent=1 // pred_check
      _
    $region47: #{tpu_custom_call.1} parent=1 // pred_check_branch
      %120 = sbr.rel (0) target = $region49
    $region48: #{tpu_custom_call.1} parent=1 // pred_region
      %122 = vsyncadd [#allocation15], 0
      %s124 = sshll.u32 %s11, 4
      %s125 = int_to_ptr.hbm [resolvable:$true] %s124
      %s126 = sshll.u32 [#allocation14], 4
      %s127 = int_to_ptr.vmem [resolvable:$true] %s126
      %129 = dma.hbm_to_vmem [thread:$0]  %s125, 16, %s127, [#allocation15]
    $region49: #{tpu_custom_call.1} parent=1 // pred_fallthru
      _
    // Predicated region
    $region50: #{tpu_custom_call.1} parent=1 // pred_check
      _
    $region51: #{tpu_custom_call.1} parent=1 // pred_check_branch
      %131 = sbr.rel (0) target = $region53
    $region52: #{tpu_custom_call.1} parent=1 // pred_region
      %133 = vsyncadd [#allocation15], 0
      %s135 = sshll.u32 %s12, 4
      %s136 = int_to_ptr.hbm [resolvable:$true] %s135
      %s137 = sshll.u32 [#allocation16], 4
      %s138 = int_to_ptr.vmem [resolvable:$true] %s137
      %140 = dma.hbm_to_vmem [thread:$0]  %s136, 16, %s138, [#allocation15]
    $region53: #{tpu_custom_call.1} parent=1 // pred_fallthru
      _
    // Predicated region
    $region54: #{tpu_custom_call.1} parent=1 // pred_check
      _
    $region55: #{tpu_custom_call.1} parent=1 // pred_check_branch
      %142 = sbr.rel (0) target = $region57
    $region56: #{tpu_custom_call.1} parent=1 // pred_region
      _
    $region57: #{tpu_custom_call.1} parent=1 // pred_fallthru
      _
    // Predicated region
    $region58: #{tpu_custom_call.1} parent=1 // pred_check
      _
    $region59: #{tpu_custom_call.1} parent=1 // pred_check_branch
      %144 = sbr.rel (0) target = $region61
    $region60: #{tpu_custom_call.1} parent=1 // pred_region
      %146 = vsyncadd [#allocation18], 0
      %s148 = sshll.u32 %s14, 4
      %s149 = int_to_ptr.hbm [resolvable:$true] %s148
      %s150 = sshll.u32 [#allocation17], 4
      %s151 = int_to_ptr.vmem [resolvable:$true] %s150
      %153 = dma.hbm_to_vmem [thread:$0]  %s149, 16, %s151, [#allocation18]
    $region61: #{tpu_custom_call.1} parent=1 // pred_fallthru
      _
    // Predicated region
    $region62: #{tpu_custom_call.1} parent=1 // pred_check
      _
    $region63: #{tpu_custom_call.1} parent=1 // pred_check_branch
      %155 = sbr.rel (0) target = $region65
    $region64: #{tpu_custom_call.1} parent=1 // pred_region
      %157 = vsyncadd [#allocation18], 0
      %s158 = sshll.u32 %s15, 4
      %s159 = int_to_ptr.hbm [resolvable:$true] %s158
      %s160 = sshll.u32 [#allocation19], 4
      %s161 = int_to_ptr.vmem [resolvable:$true] %s160
      %166 = dma.hbm_to_vmem [thread:$0]  %s159, 256, %s161, [#allocation18], 64, 64, 4
    $region65: #{tpu_custom_call.1} parent=1 // pred_fallthru
      _
    // Predicated region
    $region66: #{tpu_custom_call.1} parent=1 // pred_check
      _
    $region67: #{tpu_custom_call.1} parent=1 // pred_check_branch
      %168 = sbr.rel (0) target = $region69
    $region68: #{tpu_custom_call.1} parent=1 // pred_region
      _
    $region69: #{tpu_custom_call.1} parent=1 // pred_fallthru
      _
    // Predicated region
    $region70: #{tpu_custom_call.1} parent=1 // pred_check
      _
    $region71: #{tpu_custom_call.1} parent=1 // pred_check_branch
      %170 = sbr.rel (0) target = $region73
    $region72: #{tpu_custom_call.1} parent=1 // pred_region
      %172 = vsyncadd [#allocation21], 0
      %s174 = sshll.u32 %s17, 4
      %s175 = int_to_ptr.hbm [resolvable:$true] %s174
      %s176 = sshll.u32 [#allocation20], 4
      %s177 = int_to_ptr.vmem [resolvable:$true] %s176
      %179 = dma.hbm_to_vmem [thread:$0]  %s175, 128, %s177, [#allocation21]
    $region73: #{tpu_custom_call.1} parent=1 // pred_fallthru
      _
    // Predicated region
    $region74: #{tpu_custom_call.1} parent=1 // pred_check
      _
    $region75: #{tpu_custom_call.1} parent=1 // pred_check_branch
      %181 = sbr.rel (0) target = $region77
    $region76: #{tpu_custom_call.1} parent=1 // pred_region
      _
    $region77: #{tpu_custom_call.1} parent=1 // pred_fallthru
      _
    // Predicated region
    $region78: #{tpu_custom_call.1} parent=1 // pred_check
      _
    $region79: #{tpu_custom_call.1} parent=1 // pred_check_branch
      %183 = sbr.rel (0) target = $region81
    $region80: #{tpu_custom_call.1} parent=1 // pred_region
      %185 = dma.done [#allocation3], 16
    $region81: #{tpu_custom_call.1} parent=1 // pred_fallthru
      _
    // Predicated region
    $region82: #{tpu_custom_call.1} parent=1 // pred_check
      _
    $region83: #{tpu_custom_call.1} parent=1 // pred_check_branch
      %187 = sbr.rel (0) target = $region85
    $region84: #{tpu_custom_call.1} parent=1 // pred_region
      %189 = dma.done [#allocation6], 16
    $region85: #{tpu_custom_call.1} parent=1 // pred_fallthru
      _
    // Predicated region
    $region86: #{tpu_custom_call.1} parent=1 // pred_check
      _
    $region87: #{tpu_custom_call.1} parent=1 // pred_check_branch
      %191 = sbr.rel (0) target = $region89
    $region88: #{tpu_custom_call.1} parent=1 // pred_region
      %193 = dma.done [#allocation6], 16
    $region89: #{tpu_custom_call.1} parent=1 // pred_fallthru
      _
    // Predicated region
    $region90: #{tpu_custom_call.1} parent=1 // pred_check
      _
    $region91: #{tpu_custom_call.1} parent=1 // pred_check_branch
      %195 = sbr.rel (0) target = $region93
    $region92: #{tpu_custom_call.1} parent=1 // pred_region
      %197 = dma.done [#allocation9], 16
    $region93: #{tpu_custom_call.1} parent=1 // pred_fallthru
      _
    // Predicated region
    $region94: #{tpu_custom_call.1} parent=1 // pred_check
      _
    $region95: #{tpu_custom_call.1} parent=1 // pred_check_branch
      %199 = sbr.rel (0) target = $region97
    $region96: #{tpu_custom_call.1} parent=1 // pred_region
      %201 = dma.done [#allocation9], 256
    $region97: #{tpu_custom_call.1} parent=1 // pred_fallthru
      _
    // Predicated region
    $region98: #{tpu_custom_call.1} parent=1 // pred_check
      _
    $region99: #{tpu_custom_call.1} parent=1 // pred_check_branch
      %203 = sbr.rel (0) target = $region101
    $region100: #{tpu_custom_call.1} parent=1 // pred_region
      %205 = dma.done [#allocation12], 16
    $region101: #{tpu_custom_call.1} parent=1 // pred_fallthru
      _
    // Predicated region
    $region102: #{tpu_custom_call.1} parent=1 // pred_check
      _
    $region103: #{tpu_custom_call.1} parent=1 // pred_check_branch
      %207 = sbr.rel (0) target = $region105
    $region104: #{tpu_custom_call.1} parent=1 // pred_region
      %209 = dma.done [#allocation12], 16
    $region105: #{tpu_custom_call.1} parent=1 // pred_fallthru
      _
    // Predicated region
    $region106: #{tpu_custom_call.1} parent=1 // pred_check
      _
    $region107: #{tpu_custom_call.1} parent=1 // pred_check_branch
      %211 = sbr.rel (0) target = $region109
    $region108: #{tpu_custom_call.1} parent=1 // pred_region
      %213 = dma.done [#allocation15], 16
    $region109: #{tpu_custom_call.1} parent=1 // pred_fallthru
      _
    // Predicated region
    $region110: #{tpu_custom_call.1} parent=1 // pred_check
      _
    $region111: #{tpu_custom_call.1} parent=1 // pred_check_branch
      %215 = sbr.rel (0) target = $region113
    $region112: #{tpu_custom_call.1} parent=1 // pred_region
      %217 = dma.done [#allocation15], 16
    $region113: #{tpu_custom_call.1} parent=1 // pred_fallthru
      _
    // Predicated region
    $region114: #{tpu_custom_call.1} parent=1 // pred_check
      _
    $region115: #{tpu_custom_call.1} parent=1 // pred_check_branch
      %219 = sbr.rel (0) target = $region117
    $region116: #{tpu_custom_call.1} parent=1 // pred_region
      %221 = dma.done [#allocation18], 16
    $region117: #{tpu_custom_call.1} parent=1 // pred_fallthru
      _
    // Predicated region
    $region118: #{tpu_custom_call.1} parent=1 // pred_check
      _
    $region119: #{tpu_custom_call.1} parent=1 // pred_check_branch
      %223 = sbr.rel (0) target = $region121
    $region120: #{tpu_custom_call.1} parent=1 // pred_region
      %225 = dma.done [#allocation18], 256
    $region121: #{tpu_custom_call.1} parent=1 // pred_fallthru
      _
    // Predicated region
    $region122: #{tpu_custom_call.1} parent=1 // pred_check
      _
    $region123: #{tpu_custom_call.1} parent=1 // pred_check_branch
      %227 = sbr.rel (0) target = $region125
    $region124: #{tpu_custom_call.1} parent=1 // pred_region
      %229 = dma.done [#allocation21], 128
    $region125: #{tpu_custom_call.1} parent=1 // pred_fallthru
      _
    %v231 = vld [vmem:[%s0] sm:$0xff]
    %v232 = vld [vmem:[%s0 + $0x8] sm:$0xff]
    %v233 = vld [vmem:[%s0 + $0x10] sm:$0xff]
    %v234 = vld [vmem:[%s0 + $0x18] sm:$0xff]
    %v235 = vld [vmem:[%s0 + $0x20] sm:$0xff]
    %v236 = vld [vmem:[%s0 + $0x28] sm:$0xff]
    %v237 = vld [vmem:[%s0 + $0x30] sm:$0xff]
    %v238 = vld [vmem:[%s0 + $0x38] sm:$0xff]
    %v239 = vpack.c.bf16 %v232, %v231
    %v240 = vpack.c.bf16 %v234, %v233
    %v241 = vpack.c.bf16 %v236, %v235
    %v242 = vpack.c.bf16 %v238, %v237
    %v243 = vld [vmem:[%s1] sm:$0xf]
    %v244 = vld [vmem:[%s1 + $0x4] sm:$0xf]
    %v245 = vld [vmem:[%s1 + $0x8] sm:$0xf]
    %v246 = vld [vmem:[%s1 + $0xc] sm:$0xf]
    %v247 = vld [vmem:[#allocation2] sm:$0x1]
    %v249 = vperm.slane %v247, 0
    %v255 = vunpack.c.l.b16 %v243
    %v256 = vunpack.c.l.b16 %v244
    %v257 = vunpack.c.l.b16 %v245
    %v258 = vunpack.c.l.b16 %v246
    %v259 = vpack.c.b16 %v256, %v255
    %v260 = vpack.c.b16 %v258, %v257
    %vm263 = vcmask 261120
    %v265 = vsel %vm263, %v239, 0
    %v268 = vsel %vm263, %v240, 0
    %v271 = vsel %vm263, %v241, 0
    %v274 = vsel %vm263, %v242, 0
    %276 = vmatpush.bf16.msra.mxu0 0
    %277 = vmatpush.bf16.msra.mxu0 0
    %278 = vmatpush.bf16.msra.mxu0 0
    %279 = vmatpush.bf16.msra.mxu0 0
    %280 = vmatpush.bf16.msra.mxu0 0
    %281 = vmatpush.bf16.msra.mxu0 0
    %282 = vmatpush.bf16.msra.mxu0 %v260
    %283 = vmatpush.bf16.msra.mxu0 %v259
    %284 = vmatmul.bf16.gmra.mxu0 %v265
    %v285 = vpop.f32.mrf.mxu0
    %v286 = vadd.f32 %v249, %v285
    %v287 = vpop.f32.mrf.mxu0
    %v288 = vadd.f32 %v249, %v287
    %289 = vmatmul.bf16.gmra.mxu0 %v268
    %v290 = vpop.f32.mrf.mxu0
    %v291 = vadd.f32 %v249, %v290
    %v292 = vpop.f32.mrf.mxu0
    %v293 = vadd.f32 %v249, %v292
    %294 = vmatmul.bf16.gmra.mxu0 %v271
    %v295 = vpop.f32.mrf.mxu0
    %v296 = vadd.f32 %v249, %v295
    %v297 = vpop.f32.mrf.mxu0
    %v298 = vadd.f32 %v249, %v297
    %299 = vmatmul.bf16.gmra.mxu0 %v274
    %v300 = vpop.f32.mrf.mxu0
    %v301 = vadd.f32 %v249, %v300
    %v302 = vpop.f32.mrf.mxu0
    %v303 = vadd.f32 %v249, %v302
    %304 = vdwg.mxu0
    %v305 = vpack.c.bf16 %v286, %v286
    %v306 = vpack.c.bf16 %v288, %v288
    %v307 = vpack.c.bf16 %v291, %v291
    %v308 = vpack.c.bf16 %v293, %v293
    %v309 = vpack.c.bf16 %v296, %v296
    %v310 = vpack.c.bf16 %v298, %v298
    %v311 = vpack.c.bf16 %v301, %v301
    %v312 = vpack.c.bf16 %v303, %v303
    %v313 = vld [vmem:[#allocation19] sm:$0xf]
    %v314 = vld [vmem:[#allocation19 + $0x4] sm:$0xf]
    %v315 = vld [vmem:[#allocation19 + $0x8] sm:$0xf]
    %v316 = vld [vmem:[#allocation19 + $0xc] sm:$0xf]
    %v325 = vunpack.c.l.b16 %v305
    %v326 = vunpack.c.l.b16 %v306
    %v327 = vunpack.c.l.b16 %v307
    %v328 = vunpack.c.l.b16 %v308
    %v329 = vunpack.c.l.b16 %v309
    %v330 = vunpack.c.l.b16 %v310
    %v331 = vunpack.c.l.b16 %v311
    %v332 = vunpack.c.l.b16 %v312
    %v333 = vpack.c.b16 %v325, %v325
    %v334 = vpack.c.b16 %v326, %v326
    %v335 = vpack.c.b16 %v327, %v327
    %v336 = vpack.c.b16 %v328, %v328
    %v337 = vpack.c.b16 %v329, %v329
    %v338 = vpack.c.b16 %v330, %v330
    %v339 = vpack.c.b16 %v331, %v331
    %v340 = vpack.c.b16 %v332, %v332
    %vm341 = vcmask 1043456
    %v344 = vsel %vm341, %v305, %v333
    %v348 = vsel %vm341, %v306, %v334
    %v352 = vsel %vm341, %v307, %v335
    %v356 = vsel %vm341, %v308, %v336
    %v360 = vsel %vm341, %v309, %v337
    %v364 = vsel %vm341, %v310, %v338
    %v368 = vsel %vm341, %v311, %v339
    %v372 = vsel %vm341, %v312, %v340
    %v374 = vunpack.c.l.bf16 %v344
    %v375 = vunpack.c.h.bf16 %v344
    %v376 = vunpack.c.l.bf16 %v348
    %v377 = vunpack.c.h.bf16 %v348
    %v378 = vunpack.c.l.bf16 %v352
    %v379 = vunpack.c.h.bf16 %v352
    %v380 = vunpack.c.l.bf16 %v356
    %v381 = vunpack.c.h.bf16 %v356
    %v382 = vunpack.c.l.bf16 %v360
    %v383 = vunpack.c.h.bf16 %v360
    %v384 = vunpack.c.l.bf16 %v364
    %v385 = vunpack.c.h.bf16 %v364
    %v386 = vunpack.c.l.bf16 %v368
    %v387 = vunpack.c.h.bf16 %v368
    %v388 = vunpack.c.l.bf16 %v372
    %v389 = vunpack.c.h.bf16 %v372
    %v390 = vunpack.c.l.bf16 %v313
    %v391 = vunpack.c.l.bf16 %v314
    %v392 = vunpack.c.l.bf16 %v315
    %v393 = vunpack.c.l.bf16 %v316
    %398 = vrot.lane.b32.xlu0 %v390, 32
    %v399 = vpop.permute.xlu0 %398
    %400 = vrot.lane.b32.xlu0 %v391, 32
    %v401 = vpop.permute.xlu0 %400
    %402 = vrot.lane.b32.xlu0 %v392, 32
    %v403 = vpop.permute.xlu0 %402
    %404 = vrot.lane.b32.xlu0 %v393, 32
    %v405 = vpop.permute.xlu0 %404
    %v410 = vmul.f32 %v374, %v399
    %v411 = vmul.f32 %v375, %v401
    %v412 = vmul.f32 %v374, %v403
    %v413 = vmul.f32 %v375, %v405
    %v414 = vmul.f32 %v376, %v399
    %v415 = vmul.f32 %v377, %v401
    %v416 = vmul.f32 %v376, %v403
    %v417 = vmul.f32 %v377, %v405
    %v418 = vmul.f32 %v378, %v399
    %v419 = vmul.f32 %v379, %v401
    %v420 = vmul.f32 %v378, %v403
    %v421 = vmul.f32 %v379, %v405
    %v422 = vmul.f32 %v380, %v399
    %v423 = vmul.f32 %v381, %v401
    %v424 = vmul.f32 %v380, %v403
    %v425 = vmul.f32 %v381, %v405
    %v426 = vmul.f32 %v382, %v399
    %v427 = vmul.f32 %v383, %v401
    %v428 = vmul.f32 %v382, %v403
    %v429 = vmul.f32 %v383, %v405
    %v430 = vmul.f32 %v384, %v399
    %v431 = vmul.f32 %v385, %v401
    %v432 = vmul.f32 %v384, %v403
    %v433 = vmul.f32 %v385, %v405
    %v434 = vmul.f32 %v386, %v399
    %v435 = vmul.f32 %v387, %v401
    %v436 = vmul.f32 %v386, %v403
    %v437 = vmul.f32 %v387, %v405
    %v438 = vmul.f32 %v388, %v399
    %v439 = vmul.f32 %v389, %v401
    %v440 = vmul.f32 %v388, %v403
    %v441 = vmul.f32 %v389, %v405
    %v442 = vpack.c.bf16 %v410, %v410
    %v443 = vpack.c.bf16 %v411, %v411
    %v444 = vpack.c.bf16 %v412, %v412
    %v445 = vpack.c.bf16 %v413, %v413
    %v446 = vpack.c.bf16 %v414, %v414
    %v447 = vpack.c.bf16 %v415, %v415
    %v448 = vpack.c.bf16 %v416, %v416
    %v449 = vpack.c.bf16 %v417, %v417
    %v450 = vpack.c.bf16 %v418, %v418
    %v451 = vpack.c.bf16 %v419, %v419
    %v452 = vpack.c.bf16 %v420, %v420
    %v453 = vpack.c.bf16 %v421, %v421
    %v454 = vpack.c.bf16 %v422, %v422
    %v455 = vpack.c.bf16 %v423, %v423
    %v456 = vpack.c.bf16 %v424, %v424
    %v457 = vpack.c.bf16 %v425, %v425
    %v458 = vpack.c.bf16 %v426, %v426
    %v459 = vpack.c.bf16 %v427, %v427
    %v460 = vpack.c.bf16 %v428, %v428
    %v461 = vpack.c.bf16 %v429, %v429
    %v462 = vpack.c.bf16 %v430, %v430
    %v463 = vpack.c.bf16 %v431, %v431
    %v464 = vpack.c.bf16 %v432, %v432
    %v465 = vpack.c.bf16 %v433, %v433
    %v466 = vpack.c.bf16 %v434, %v434
    %v467 = vpack.c.bf16 %v435, %v435
    %v468 = vpack.c.bf16 %v436, %v436
    %v469 = vpack.c.bf16 %v437, %v437
    %v470 = vpack.c.bf16 %v438, %v438
    %v471 = vpack.c.bf16 %v439, %v439
    %v472 = vpack.c.bf16 %v440, %v440
    %v473 = vpack.c.bf16 %v441, %v441
    %474 = vrot.lane.b32.xlu0 %v390, 64
    %v475 = vpop.permute.xlu0 %474
    %476 = vrot.lane.b32.xlu0 %v391, 64
    %v477 = vpop.permute.xlu0 %476
    %478 = vrot.lane.b32.xlu0 %v392, 64
    %v479 = vpop.permute.xlu0 %478
    %480 = vrot.lane.b32.xlu0 %v393, 64
    %v481 = vpop.permute.xlu0 %480
    %v486 = vmul.f32 %v374, %v475
    %v487 = vmul.f32 %v375, %v477
    %v488 = vmul.f32 %v374, %v479
    %v489 = vmul.f32 %v375, %v481
    %v490 = vmul.f32 %v376, %v475
    %v491 = vmul.f32 %v377, %v477
    %v492 = vmul.f32 %v376, %v479
    %v493 = vmul.f32 %v377, %v481
    %v494 = vmul.f32 %v378, %v475
    %v495 = vmul.f32 %v379, %v477
    %v496 = vmul.f32 %v378, %v479
    %v497 = vmul.f32 %v379, %v481
    %v498 = vmul.f32 %v380, %v475
    %v499 = vmul.f32 %v381, %v477
    %v500 = vmul.f32 %v380, %v479
    %v501 = vmul.f32 %v381, %v481
    %v502 = vmul.f32 %v382, %v475
    %v503 = vmul.f32 %v383, %v477
    %v504 = vmul.f32 %v382, %v479
    %v505 = vmul.f32 %v383, %v481
    %v506 = vmul.f32 %v384, %v475
    %v507 = vmul.f32 %v385, %v477
    %v508 = vmul.f32 %v384, %v479
    %v509 = vmul.f32 %v385, %v481
    %v510 = vmul.f32 %v386, %v475
    %v511 = vmul.f32 %v387, %v477
    %v512 = vmul.f32 %v386, %v479
    %v513 = vmul.f32 %v387, %v481
    %v514 = vmul.f32 %v388, %v475
    %v515 = vmul.f32 %v389, %v477
    %v516 = vmul.f32 %v388, %v479
    %v517 = vmul.f32 %v389, %v481
    %v518 = vpack.c.bf16 %v486, %v486
    %v519 = vpack.c.bf16 %v487, %v487
    %v520 = vpack.c.bf16 %v488, %v488
    %v521 = vpack.c.bf16 %v489, %v489
    %v522 = vpack.c.bf16 %v490, %v490
    %v523 = vpack.c.bf16 %v491, %v491
    %v524 = vpack.c.bf16 %v492, %v492
    %v525 = vpack.c.bf16 %v493, %v493
    %v526 = vpack.c.bf16 %v494, %v494
    %v527 = vpack.c.bf16 %v495, %v495
    %v528 = vpack.c.bf16 %v496, %v496
    %v529 = vpack.c.bf16 %v497, %v497
    %v530 = vpack.c.bf16 %v498, %v498
    %v531 = vpack.c.bf16 %v499, %v499
    %v532 = vpack.c.bf16 %v500, %v500
    %v533 = vpack.c.bf16 %v501, %v501
    %v534 = vpack.c.bf16 %v502, %v502
    %v535 = vpack.c.bf16 %v503, %v503
    %v536 = vpack.c.bf16 %v504, %v504
    %v537 = vpack.c.bf16 %v505, %v505
    %v538 = vpack.c.bf16 %v506, %v506
    %v539 = vpack.c.bf16 %v507, %v507
    %v540 = vpack.c.bf16 %v508, %v508
    %v541 = vpack.c.bf16 %v509, %v509
    %v542 = vpack.c.bf16 %v510, %v510
    %v543 = vpack.c.bf16 %v511, %v511
    %v544 = vpack.c.bf16 %v512, %v512
    %v545 = vpack.c.bf16 %v513, %v513
    %v546 = vpack.c.bf16 %v514, %v514
    %v547 = vpack.c.bf16 %v515, %v515
    %v548 = vpack.c.bf16 %v516, %v516
    %v549 = vpack.c.bf16 %v517, %v517
    %v554 = vunpack.c.l.b16 %v442
    %v555 = vunpack.c.l.b16 %v443
    %v556 = vunpack.c.l.b16 %v444
    %v557 = vunpack.c.l.b16 %v445
    %v558 = vpack.c.b16 %v555, %v554
    %v559 = vpack.c.b16 %v557, %v556
    %560 = vrot.lane.b32.xlu0 %v558, 96
    %v561 = vpop.permute.xlu0 %560
    %562 = vrot.lane.b32.xlu0 %v559, 96
    %v563 = vpop.permute.xlu0 %562
    %v564 = vsel %vm263, %v305, 0
    %v567 = vsel %vm263, %v561, 0
    %v570 = vsel %vm263, %v563, 0
    %572 = vmatpush.bf16.xpose.msra.mxu0 0
    %573 = vmatpush.bf16.xpose.msra.mxu0 0
    %574 = vmatpush.bf16.xpose.msra.mxu0 0
    %575 = vmatpush.bf16.xpose.msra.mxu0 0
    %576 = vmatpush.bf16.xpose.msra.mxu0 0
    %577 = vmatpush.bf16.xpose.msra.mxu0 0
    %578 = vmatpush.bf16.xpose.msra.mxu0 %v570
    %579 = vmatpush.bf16.xpose.msra.mxu0 %v567
    %580 = vmatmul.bf16.gmra.mxu0 %v564
    %v581 = vpop.f32.mrf.mxu0
    %v582 = vadd.f32 0.0, %v581
    %v583 = vpop.f32.mrf.mxu0
    %584 = vdwg.mxu0
    %v589 = vunpack.c.l.b16 %v446
    %v590 = vunpack.c.l.b16 %v447
    %v591 = vunpack.c.l.b16 %v448
    %v592 = vunpack.c.l.b16 %v449
    %v593 = vpack.c.b16 %v590, %v589
    %v594 = vpack.c.b16 %v592, %v591
    %595 = vrot.lane.b32.xlu0 %v593, 96
    %v596 = vpop.permute.xlu0 %595
    %597 = vrot.lane.b32.xlu0 %v594, 96
    %v598 = vpop.permute.xlu0 %597
    %v599 = vsel %vm263, %v306, 0
    %v602 = vsel %vm263, %v596, 0
    %v605 = vsel %vm263, %v598, 0
    %607 = vmatpush.bf16.xpose.msra.mxu0 0
    %608 = vmatpush.bf16.xpose.msra.mxu0 0
    %609 = vmatpush.bf16.xpose.msra.mxu0 0
    %610 = vmatpush.bf16.xpose.msra.mxu0 0
    %611 = vmatpush.bf16.xpose.msra.mxu0 0
    %612 = vmatpush.bf16.xpose.msra.mxu0 0
    %613 = vmatpush.bf16.xpose.msra.mxu0 %v605
    %614 = vmatpush.bf16.xpose.msra.mxu0 %v602
    %615 = vmatmul.bf16.gmra.mxu0 %v599
    %v616 = vpop.f32.mrf.mxu0
    %v617 = vadd.f32 0.0, %v616
    %v618 = vpop.f32.mrf.mxu0
    %619 = vdwg.mxu0
    %v624 = vunpack.c.l.b16 %v450
    %v625 = vunpack.c.l.b16 %v451
    %v626 = vunpack.c.l.b16 %v452
    %v627 = vunpack.c.l.b16 %v453
    %v628 = vpack.c.b16 %v625, %v624
    %v629 = vpack.c.b16 %v627, %v626
    %630 = vrot.lane.b32.xlu0 %v628, 96
    %v631 = vpop.permute.xlu0 %630
    %632 = vrot.lane.b32.xlu0 %v629, 96
    %v633 = vpop.permute.xlu0 %632
    %v634 = vsel %vm263, %v307, 0
    %v637 = vsel %vm263, %v631, 0
    %v640 = vsel %vm263, %v633, 0
    %642 = vmatpush.bf16.xpose.msra.mxu0 0
    %643 = vmatpush.bf16.xpose.msra.mxu0 0
    %644 = vmatpush.bf16.xpose.msra.mxu0 0
    %645 = vmatpush.bf16.xpose.msra.mxu0 0
    %646 = vmatpush.bf16.xpose.msra.mxu0 0
    %647 = vmatpush.bf16.xpose.msra.mxu0 0
    %648 = vmatpush.bf16.xpose.msra.mxu0 %v640
    %649 = vmatpush.bf16.xpose.msra.mxu0 %v637
    %650 = vmatmul.bf16.gmra.mxu0 %v634
    %v651 = vpop.f32.mrf.mxu0
    %v652 = vadd.f32 0.0, %v651
    %v653 = vpop.f32.mrf.mxu0
    %654 = vdwg.mxu0
    %v659 = vunpack.c.l.b16 %v454
    %v660 = vunpack.c.l.b16 %v455
    %v661 = vunpack.c.l.b16 %v456
    %v662 = vunpack.c.l.b16 %v457
    %v663 = vpack.c.b16 %v660, %v659
    %v664 = vpack.c.b16 %v662, %v661
    %665 = vrot.lane.b32.xlu0 %v663, 96
    %v666 = vpop.permute.xlu0 %665
    %667 = vrot.lane.b32.xlu0 %v664, 96
    %v668 = vpop.permute.xlu0 %667
    %v669 = vsel %vm263, %v308, 0
    %v672 = vsel %vm263, %v666, 0
    %v675 = vsel %vm263, %v668, 0
    %677 = vmatpush.bf16.xpose.msra.mxu0 0
    %678 = vmatpush.bf16.xpose.msra.mxu0 0
    %679 = vmatpush.bf16.xpose.msra.mxu0 0
    %680 = vmatpush.bf16.xpose.msra.mxu0 0
    %681 = vmatpush.bf16.xpose.msra.mxu0 0
    %682 = vmatpush.bf16.xpose.msra.mxu0 0
    %683 = vmatpush.bf16.xpose.msra.mxu0 %v675
    %684 = vmatpush.bf16.xpose.msra.mxu0 %v672
    %685 = vmatmul.bf16.gmra.mxu0 %v669
    %v686 = vpop.f32.mrf.mxu0
    %v687 = vadd.f32 0.0, %v686
    %v688 = vpop.f32.mrf.mxu0
    %689 = vdwg.mxu0
    %v694 = vunpack.c.l.b16 %v458
    %v695 = vunpack.c.l.b16 %v459
    %v696 = vunpack.c.l.b16 %v460
    %v697 = vunpack.c.l.b16 %v461
    %v698 = vpack.c.b16 %v695, %v694
    %v699 = vpack.c.b16 %v697, %v696
    %700 = vrot.lane.b32.xlu0 %v698, 96
    %v701 = vpop.permute.xlu0 %700
    %702 = vrot.lane.b32.xlu0 %v699, 96
    %v703 = vpop.permute.xlu0 %702
    %v704 = vsel %vm263, %v309, 0
    %v707 = vsel %vm263, %v701, 0
    %v710 = vsel %vm263, %v703, 0
    %712 = vmatpush.bf16.xpose.msra.mxu0 0
    %713 = vmatpush.bf16.xpose.msra.mxu0 0
    %714 = vmatpush.bf16.xpose.msra.mxu0 0
    %715 = vmatpush.bf16.xpose.msra.mxu0 0
    %716 = vmatpush.bf16.xpose.msra.mxu0 0
    %717 = vmatpush.bf16.xpose.msra.mxu0 0
    %718 = vmatpush.bf16.xpose.msra.mxu0 %v710
    %719 = vmatpush.bf16.xpose.msra.mxu0 %v707
    %720 = vmatmul.bf16.gmra.mxu0 %v704
    %v721 = vpop.f32.mrf.mxu0
    %v722 = vadd.f32 0.0, %v721
    %v723 = vpop.f32.mrf.mxu0
    %724 = vdwg.mxu0
    %v729 = vunpack.c.l.b16 %v462
    %v730 = vunpack.c.l.b16 %v463
    %v731 = vunpack.c.l.b16 %v464
    %v732 = vunpack.c.l.b16 %v465
    %v733 = vpack.c.b16 %v730, %v729
    %v734 = vpack.c.b16 %v732, %v731
    %735 = vrot.lane.b32.xlu0 %v733, 96
    %v736 = vpop.permute.xlu0 %735
    %737 = vrot.lane.b32.xlu0 %v734, 96
    %v738 = vpop.permute.xlu0 %737
    %v739 = vsel %vm263, %v310, 0
    %v742 = vsel %vm263, %v736, 0
    %v745 = vsel %vm263, %v738, 0
    %747 = vmatpush.bf16.xpose.msra.mxu0 0
    %748 = vmatpush.bf16.xpose.msra.mxu0 0
    %749 = vmatpush.bf16.xpose.msra.mxu0 0
    %750 = vmatpush.bf16.xpose.msra.mxu0 0
    %751 = vmatpush.bf16.xpose.msra.mxu0 0
    %752 = vmatpush.bf16.xpose.msra.mxu0 0
    %753 = vmatpush.bf16.xpose.msra.mxu0 %v745
    %754 = vmatpush.bf16.xpose.msra.mxu0 %v742
    %755 = vmatmul.bf16.gmra.mxu0 %v739
    %v756 = vpop.f32.mrf.mxu0
    %v757 = vadd.f32 0.0, %v756
    %v758 = vpop.f32.mrf.mxu0
    %759 = vdwg.mxu0
    %v764 = vunpack.c.l.b16 %v466
    %v765 = vunpack.c.l.b16 %v467
    %v766 = vunpack.c.l.b16 %v468
    %v767 = vunpack.c.l.b16 %v469
    %v768 = vpack.c.b16 %v765, %v764
    %v769 = vpack.c.b16 %v767, %v766
    %770 = vrot.lane.b32.xlu0 %v768, 96
    %v771 = vpop.permute.xlu0 %770
    %772 = vrot.lane.b32.xlu0 %v769, 96
    %v773 = vpop.permute.xlu0 %772
    %v774 = vsel %vm263, %v311, 0
    %v777 = vsel %vm263, %v771, 0
    %v780 = vsel %vm263, %v773, 0
    %782 = vmatpush.bf16.xpose.msra.mxu0 0
    %783 = vmatpush.bf16.xpose.msra.mxu0 0
    %784 = vmatpush.bf16.xpose.msra.mxu0 0
    %785 = vmatpush.bf16.xpose.msra.mxu0 0
    %786 = vmatpush.bf16.xpose.msra.mxu0 0
    %787 = vmatpush.bf16.xpose.msra.mxu0 0
    %788 = vmatpush.bf16.xpose.msra.mxu0 %v780
    %789 = vmatpush.bf16.xpose.msra.mxu0 %v777
    %790 = vmatmul.bf16.gmra.mxu0 %v774
    %v791 = vpop.f32.mrf.mxu0
    %v792 = vadd.f32 0.0, %v791
    %v793 = vpop.f32.mrf.mxu0
    %794 = vdwg.mxu0
    %v799 = vunpack.c.l.b16 %v470
    %v800 = vunpack.c.l.b16 %v471
    %v801 = vunpack.c.l.b16 %v472
    %v802 = vunpack.c.l.b16 %v473
    %v803 = vpack.c.b16 %v800, %v799
    %v804 = vpack.c.b16 %v802, %v801
    %805 = vrot.lane.b32.xlu0 %v803, 96
    %v806 = vpop.permute.xlu0 %805
    %807 = vrot.lane.b32.xlu0 %v804, 96
    %v808 = vpop.permute.xlu0 %807
    %v809 = vsel %vm263, %v312, 0
    %v812 = vsel %vm263, %v806, 0
    %v815 = vsel %vm263, %v808, 0
    %817 = vmatpush.bf16.xpose.msra.mxu0 0
    %818 = vmatpush.bf16.xpose.msra.mxu0 0
    %819 = vmatpush.bf16.xpose.msra.mxu0 0
    %820 = vmatpush.bf16.xpose.msra.mxu0 0
    %821 = vmatpush.bf16.xpose.msra.mxu0 0
    %822 = vmatpush.bf16.xpose.msra.mxu0 0
    %823 = vmatpush.bf16.xpose.msra.mxu0 %v815
    %824 = vmatpush.bf16.xpose.msra.mxu0 %v812
    %825 = vmatmul.bf16.gmra.mxu0 %v809
    %v826 = vpop.f32.mrf.mxu0
    %v827 = vadd.f32 0.0, %v826
    %v828 = vpop.f32.mrf.mxu0
    %829 = vdwg.mxu0
    %v830 = vmul.f32 %v582, 0.35355338
    %v831 = vmul.f32 %v617, 0.35355338
    %v832 = vmul.f32 %v652, 0.35355338
    %v833 = vmul.f32 %v687, 0.35355338
    %v834 = vmul.f32 %v722, 0.35355338
    %v835 = vmul.f32 %v757, 0.35355338
    %v836 = vmul.f32 %v792, 0.35355338
    %v837 = vmul.f32 %v827, 0.35355338
    %v838 = vsel %vm263, %v830, -inf
    %839 = vmax.xlane.f32.xlu0 %v838
    %v840 = vpop.xlane.xlu0 %839
    %v841 = vsel %vm263, %v831, -inf
    %842 = vmax.xlane.f32.xlu0 %v841
    %v843 = vpop.xlane.xlu0 %842
    %v844 = vsel %vm263, %v832, -inf
    %845 = vmax.xlane.f32.xlu0 %v844
    %v846 = vpop.xlane.xlu0 %845
    %v847 = vsel %vm263, %v833, -inf
    %848 = vmax.xlane.f32.xlu0 %v847
    %v849 = vpop.xlane.xlu0 %848
    %v850 = vsel %vm263, %v834, -inf
    %851 = vmax.xlane.f32.xlu0 %v850
    %v852 = vpop.xlane.xlu0 %851
    %v853 = vsel %vm263, %v835, -inf
    %854 = vmax.xlane.f32.xlu0 %v853
    %v855 = vpop.xlane.xlu0 %854
    %v856 = vsel %vm263, %v836, -inf
    %857 = vmax.xlane.f32.xlu0 %v856
    %v858 = vpop.xlane.xlu0 %857
    %v859 = vsel %vm263, %v837, -inf
    %860 = vmax.xlane.f32.xlu0 %v859
    %v861 = vpop.xlane.xlu0 %860
    %v862 = vsub.f32 %v830, %v840
    %v863 = vsub.f32 %v831, %v843
    %v864 = vsub.f32 %v832, %v846
    %v865 = vsub.f32 %v833, %v849
    %v866 = vsub.f32 %v834, %v852
    %v867 = vsub.f32 %v835, %v855
    %v868 = vsub.f32 %v836, %v858
    %v869 = vsub.f32 %v837, %v861
    %v870 = vmul.f32 %v862, 1.442695
    %v871 = vpow.pop %v870
    %v872 = vmul.f32 %v863, 1.442695
    %v873 = vpow.pop %v872
    %v874 = vmul.f32 %v864, 1.442695
    %v875 = vpow.pop %v874
    %v876 = vmul.f32 %v865, 1.442695
    %v877 = vpow.pop %v876
    %v878 = vmul.f32 %v866, 1.442695
    %v879 = vpow.pop %v878
    %v880 = vmul.f32 %v867, 1.442695
    %v881 = vpow.pop %v880
    %v882 = vmul.f32 %v868, 1.442695
    %v883 = vpow.pop %v882
    %v884 = vmul.f32 %v869, 1.442695
    %v885 = vpow.pop %v884
    %v886 = vld [vmem:[%s16] sm:$0xff]
    %v887 = vld [vmem:[%s16 + $0x8] sm:$0xff]
    %v888 = vld [vmem:[%s16 + $0x10] sm:$0xff]
    %v889 = vld [vmem:[%s16 + $0x18] sm:$0xff]
    %v891 = vsel %vm263, %v871, 0
    %v894 = vsel %vm263, %v873, 0
    %v897 = vsel %vm263, %v875, 0
    %v900 = vsel %vm263, %v877, 0
    %v903 = vsel %vm263, %v879, 0
    %v906 = vsel %vm263, %v881, 0
    %v909 = vsel %vm263, %v883, 0
    %v912 = vsel %vm263, %v885, 0
    %914 = vmatpush.msra.mxu0 0.0
    %915 = vmatpush.msra.mxu0 0.0
    %916 = vmatpush.msra.mxu0 0.0
    %917 = vmatpush.msra.mxu0 0.0
    %918 = vmatpush.msra.mxu0 0.0
    %919 = vmatpush.msra.mxu0 0.0
    %920 = vmatpush.msra.mxu0 0.0
    %921 = vmatpush.msra.mxu0 0.0
    %922 = vmatpush.msra.mxu0 0.0
    %923 = vmatpush.msra.mxu0 0.0
    %924 = vmatpush.msra.mxu0 0.0
    %925 = vmatpush.msra.mxu0 0.0
    %926 = vmatpush.msra.mxu0 %v889
    %927 = vmatpush.msra.mxu0 %v888
    %928 = vmatpush.msra.mxu0 %v887
    %929 = vmatpush.msra.mxu0 %v886
    %930 = vmatmul.f32.gmra.mxu0 %v891
    %v931 = vpop.f32.mrf.mxu0
    %v932 = vadd.f32 0.0, %v931
    %933 = vmatmul.f32.gmra.mxu0 %v894
    %v934 = vpop.f32.mrf.mxu0
    %v935 = vadd.f32 0.0, %v934
    %936 = vmatmul.f32.gmra.mxu0 %v897
    %v937 = vpop.f32.mrf.mxu0
    %v938 = vadd.f32 0.0, %v937
    %939 = vmatmul.f32.gmra.mxu0 %v900
    %v940 = vpop.f32.mrf.mxu0
    %v941 = vadd.f32 0.0, %v940
    %942 = vmatmul.f32.gmra.mxu0 %v903
    %v943 = vpop.f32.mrf.mxu0
    %v944 = vadd.f32 0.0, %v943
    %945 = vmatmul.f32.gmra.mxu0 %v906
    %v946 = vpop.f32.mrf.mxu0
    %v947 = vadd.f32 0.0, %v946
    %948 = vmatmul.f32.gmra.mxu0 %v909
    %v949 = vpop.f32.mrf.mxu0
    %v950 = vadd.f32 0.0, %v949
    %951 = vmatmul.f32.gmra.mxu0 %v912
    %v952 = vpop.f32.mrf.mxu0
    %v953 = vadd.f32 0.0, %v952
    %954 = vdwg.mxu0
    %v955 = vrcp.pop %v932
    %v956 = vrcp.pop %v935
    %v957 = vrcp.pop %v938
    %v958 = vrcp.pop %v941
    %v959 = vrcp.pop %v944
    %v960 = vrcp.pop %v947
    %v961 = vrcp.pop %v950
    %v962 = vrcp.pop %v953
    %v963 = vmul.f32 %v871, %v955
    %v964 = vmul.f32 %v873, %v956
    %v965 = vmul.f32 %v875, %v957
    %v966 = vmul.f32 %v877, %v958
    %v967 = vmul.f32 %v879, %v959
    %v968 = vmul.f32 %v881, %v960
    %v969 = vmul.f32 %v883, %v961
    %v970 = vmul.f32 %v885, %v962
    %v971 = vpack.c.bf16 %v963, %v963
    %v972 = vpack.c.bf16 %v964, %v964
    %v973 = vpack.c.bf16 %v965, %v965
    %v974 = vpack.c.bf16 %v966, %v966
    %v975 = vpack.c.bf16 %v967, %v967
    %v976 = vpack.c.bf16 %v968, %v968
    %v977 = vpack.c.bf16 %v969, %v969
    %v978 = vpack.c.bf16 %v970, %v970
    %v983 = vunpack.c.l.b16 %v518
    %v984 = vunpack.c.l.b16 %v519
    %v985 = vunpack.c.l.b16 %v520
    %v986 = vunpack.c.l.b16 %v521
    %v987 = vpack.c.b16 %v984, %v983
    %v988 = vpack.c.b16 %v986, %v985
    %989 = vrot.lane.b32.xlu0 %v987, 64
    %v990 = vpop.permute.xlu0 %989
    %991 = vrot.lane.b32.xlu0 %v988, 64
    %v992 = vpop.permute.xlu0 %991
    %v996 = vsel %vm263, %v971, 0
    %998 = vmatpush.bf16.msra.mxu0 0
    %999 = vmatpush.bf16.msra.mxu0 0
    %1000 = vmatpush.bf16.msra.mxu0 0
    %1001 = vmatpush.bf16.msra.mxu0 0
    %1002 = vmatpush.bf16.msra.mxu0 0
    %1003 = vmatpush.bf16.msra.mxu0 0
    %1004 = vmatpush.bf16.msra.mxu0 %v992
    %1005 = vmatpush.bf16.msra.mxu0 %v990
    %1006 = vmatmul.bf16.gmra.mxu0 %v996
    %v1007 = vpop.f32.mrf.mxu0
    %v1008 = vadd.f32 0.0, %v1007
    %v1009 = vpop.f32.mrf.mxu0
    %1010 = vdwg.mxu0
    %v1015 = vunpack.c.l.b16 %v522
    %v1016 = vunpack.c.l.b16 %v523
    %v1017 = vunpack.c.l.b16 %v524
    %v1018 = vunpack.c.l.b16 %v525
    %v1019 = vpack.c.b16 %v1016, %v1015
    %v1020 = vpack.c.b16 %v1018, %v1017
    %1021 = vrot.lane.b32.xlu0 %v1019, 64
    %v1022 = vpop.permute.xlu0 %1021
    %1023 = vrot.lane.b32.xlu0 %v1020, 64
    %v1024 = vpop.permute.xlu0 %1023
    %v1028 = vsel %vm263, %v972, 0
    %1030 = vmatpush.bf16.msra.mxu0 0
    %1031 = vmatpush.bf16.msra.mxu0 0
    %1032 = vmatpush.bf16.msra.mxu0 0
    %1033 = vmatpush.bf16.msra.mxu0 0
    %1034 = vmatpush.bf16.msra.mxu0 0
    %1035 = vmatpush.bf16.msra.mxu0 0
    %1036 = vmatpush.bf16.msra.mxu0 %v1024
    %1037 = vmatpush.bf16.msra.mxu0 %v1022
    %1038 = vmatmul.bf16.gmra.mxu0 %v1028
    %v1039 = vpop.f32.mrf.mxu0
    %v1040 = vadd.f32 0.0, %v1039
    %v1041 = vpop.f32.mrf.mxu0
    %1042 = vdwg.mxu0
    %v1047 = vunpack.c.l.b16 %v526
    %v1048 = vunpack.c.l.b16 %v527
    %v1049 = vunpack.c.l.b16 %v528
    %v1050 = vunpack.c.l.b16 %v529
    %v1051 = vpack.c.b16 %v1048, %v1047
    %v1052 = vpack.c.b16 %v1050, %v1049
    %1053 = vrot.lane.b32.xlu0 %v1051, 64
    %v1054 = vpop.permute.xlu0 %1053
    %1055 = vrot.lane.b32.xlu0 %v1052, 64
    %v1056 = vpop.permute.xlu0 %1055
    %v1060 = vsel %vm263, %v973, 0
    %1062 = vmatpush.bf16.msra.mxu0 0
    %1063 = vmatpush.bf16.msra.mxu0 0
    %1064 = vmatpush.bf16.msra.mxu0 0
    %1065 = vmatpush.bf16.msra.mxu0 0
    %1066 = vmatpush.bf16.msra.mxu0 0
    %1067 = vmatpush.bf16.msra.mxu0 0
    %1068 = vmatpush.bf16.msra.mxu0 %v1056
    %1069 = vmatpush.bf16.msra.mxu0 %v1054
    %1070 = vmatmul.bf16.gmra.mxu0 %v1060
    %v1071 = vpop.f32.mrf.mxu0
    %v1072 = vadd.f32 0.0, %v1071
    %v1073 = vpop.f32.mrf.mxu0
    %1074 = vdwg.mxu0
    %v1079 = vunpack.c.l.b16 %v530
    %v1080 = vunpack.c.l.b16 %v531
    %v1081 = vunpack.c.l.b16 %v532
    %v1082 = vunpack.c.l.b16 %v533
    %v1083 = vpack.c.b16 %v1080, %v1079
    %v1084 = vpack.c.b16 %v1082, %v1081
    %1085 = vrot.lane.b32.xlu0 %v1083, 64
    %v1086 = vpop.permute.xlu0 %1085
    %1087 = vrot.lane.b32.xlu0 %v1084, 64
    %v1088 = vpop.permute.xlu0 %1087
    %v1092 = vsel %vm263, %v974, 0
    %1094 = vmatpush.bf16.msra.mxu0 0
    %1095 = vmatpush.bf16.msra.mxu0 0
    %1096 = vmatpush.bf16.msra.mxu0 0
    %1097 = vmatpush.bf16.msra.mxu0 0
    %1098 = vmatpush.bf16.msra.mxu0 0
    %1099 = vmatpush.bf16.msra.mxu0 0
    %1100 = vmatpush.bf16.msra.mxu0 %v1088
    %1101 = vmatpush.bf16.msra.mxu0 %v1086
    %1102 = vmatmul.bf16.gmra.mxu0 %v1092
    %v1103 = vpop.f32.mrf.mxu0
    %v1104 = vadd.f32 0.0, %v1103
    %v1105 = vpop.f32.mrf.mxu0
    %1106 = vdwg.mxu0
    %v1111 = vunpack.c.l.b16 %v534
    %v1112 = vunpack.c.l.b16 %v535
    %v1113 = vunpack.c.l.b16 %v536
    %v1114 = vunpack.c.l.b16 %v537
    %v1115 = vpack.c.b16 %v1112, %v1111
    %v1116 = vpack.c.b16 %v1114, %v1113
    %1117 = vrot.lane.b32.xlu0 %v1115, 64
    %v1118 = vpop.permute.xlu0 %1117
    %1119 = vrot.lane.b32.xlu0 %v1116, 64
    %v1120 = vpop.permute.xlu0 %1119
    %v1124 = vsel %vm263, %v975, 0
    %1126 = vmatpush.bf16.msra.mxu0 0
    %1127 = vmatpush.bf16.msra.mxu0 0
    %1128 = vmatpush.bf16.msra.mxu0 0
    %1129 = vmatpush.bf16.msra.mxu0 0
    %1130 = vmatpush.bf16.msra.mxu0 0
    %1131 = vmatpush.bf16.msra.mxu0 0
    %1132 = vmatpush.bf16.msra.mxu0 %v1120
    %1133 = vmatpush.bf16.msra.mxu0 %v1118
    %1134 = vmatmul.bf16.gmra.mxu0 %v1124
    %v1135 = vpop.f32.mrf.mxu0
    %v1136 = vadd.f32 0.0, %v1135
    %v1137 = vpop.f32.mrf.mxu0
    %1138 = vdwg.mxu0
    %v1143 = vunpack.c.l.b16 %v538
    %v1144 = vunpack.c.l.b16 %v539
    %v1145 = vunpack.c.l.b16 %v540
    %v1146 = vunpack.c.l.b16 %v541
    %v1147 = vpack.c.b16 %v1144, %v1143
    %v1148 = vpack.c.b16 %v1146, %v1145
    %1149 = vrot.lane.b32.xlu0 %v1147, 64
    %v1150 = vpop.permute.xlu0 %1149
    %1151 = vrot.lane.b32.xlu0 %v1148, 64
    %v1152 = vpop.permute.xlu0 %1151
    %v1156 = vsel %vm263, %v976, 0
    %1158 = vmatpush.bf16.msra.mxu0 0
    %1159 = vmatpush.bf16.msra.mxu0 0
    %1160 = vmatpush.bf16.msra.mxu0 0
    %1161 = vmatpush.bf16.msra.mxu0 0
    %1162 = vmatpush.bf16.msra.mxu0 0
    %1163 = vmatpush.bf16.msra.mxu0 0
    %1164 = vmatpush.bf16.msra.mxu0 %v1152
    %1165 = vmatpush.bf16.msra.mxu0 %v1150
    %1166 = vmatmul.bf16.gmra.mxu0 %v1156
    %v1167 = vpop.f32.mrf.mxu0
    %v1168 = vadd.f32 0.0, %v1167
    %v1169 = vpop.f32.mrf.mxu0
    %1170 = vdwg.mxu0
    %v1175 = vunpack.c.l.b16 %v542
    %v1176 = vunpack.c.l.b16 %v543
    %v1177 = vunpack.c.l.b16 %v544
    %v1178 = vunpack.c.l.b16 %v545
    %v1179 = vpack.c.b16 %v1176, %v1175
    %v1180 = vpack.c.b16 %v1178, %v1177
    %1181 = vrot.lane.b32.xlu0 %v1179, 64
    %v1182 = vpop.permute.xlu0 %1181
    %1183 = vrot.lane.b32.xlu0 %v1180, 64
    %v1184 = vpop.permute.xlu0 %1183
    %v1188 = vsel %vm263, %v977, 0
    %1190 = vmatpush.bf16.msra.mxu0 0
    %1191 = vmatpush.bf16.msra.mxu0 0
    %1192 = vmatpush.bf16.msra.mxu0 0
    %1193 = vmatpush.bf16.msra.mxu0 0
    %1194 = vmatpush.bf16.msra.mxu0 0
    %1195 = vmatpush.bf16.msra.mxu0 0
    %1196 = vmatpush.bf16.msra.mxu0 %v1184
    %1197 = vmatpush.bf16.msra.mxu0 %v1182
    %1198 = vmatmul.bf16.gmra.mxu0 %v1188
    %v1199 = vpop.f32.mrf.mxu0
    %v1200 = vadd.f32 0.0, %v1199
    %v1201 = vpop.f32.mrf.mxu0
    %1202 = vdwg.mxu0
    %v1207 = vunpack.c.l.b16 %v546
    %v1208 = vunpack.c.l.b16 %v547
    %v1209 = vunpack.c.l.b16 %v548
    %v1210 = vunpack.c.l.b16 %v549
    %v1211 = vpack.c.b16 %v1208, %v1207
    %v1212 = vpack.c.b16 %v1210, %v1209
    %1213 = vrot.lane.b32.xlu0 %v1211, 64
    %v1214 = vpop.permute.xlu0 %1213
    %1215 = vrot.lane.b32.xlu0 %v1212, 64
    %v1216 = vpop.permute.xlu0 %1215
    %v1220 = vsel %vm263, %v978, 0
    %1222 = vmatpush.bf16.msra.mxu0 0
    %1223 = vmatpush.bf16.msra.mxu0 0
    %1224 = vmatpush.bf16.msra.mxu0 0
    %1225 = vmatpush.bf16.msra.mxu0 0
    %1226 = vmatpush.bf16.msra.mxu0 0
    %1227 = vmatpush.bf16.msra.mxu0 0
    %1228 = vmatpush.bf16.msra.mxu0 %v1216
    %1229 = vmatpush.bf16.msra.mxu0 %v1214
    %1230 = vmatmul.bf16.gmra.mxu0 %v1220
    %v1231 = vpop.f32.mrf.mxu0
    %v1232 = vadd.f32 0.0, %v1231
    %v1233 = vpop.f32.mrf.mxu0
    %1234 = vdwg.mxu0
    %v1235 = vpack.c.bf16 %v1040, %v1008
    %v1236 = vpack.c.bf16 %v1104, %v1072
    %v1237 = vpack.c.bf16 %v1168, %v1136
    %v1238 = vpack.c.bf16 %v1232, %v1200
    %v1239 = vld [vmem:[%s3] sm:$0xf]
    %v1240 = vld [vmem:[%s3 + $0x4] sm:$0xf]
    %v1241 = vld [vmem:[%s3 + $0x8] sm:$0xf]
    %v1242 = vld [vmem:[%s3 + $0xc] sm:$0xf]
    %v1243 = vld [vmem:[#allocation5] sm:$0x1]
    %v1245 = vperm.slane %v1243, 0
    %v1251 = vunpack.c.l.b16 %v1239
    %v1252 = vunpack.c.l.b16 %v1240
    %v1253 = vunpack.c.l.b16 %v1241
    %v1254 = vunpack.c.l.b16 %v1242
    %v1255 = vpack.c.b16 %v1252, %v1251
    %v1256 = vpack.c.b16 %v1254, %v1253
    %v1260 = vsel %vm263, %v1235, 0
    %v1263 = vsel %vm263, %v1236, 0
    %v1266 = vsel %vm263, %v1237, 0
    %v1269 = vsel %vm263, %v1238, 0
    %1271 = vmatpush.bf16.msra.mxu0 0
    %1272 = vmatpush.bf16.msra.mxu0 0
    %1273 = vmatpush.bf16.msra.mxu0 0
    %1274 = vmatpush.bf16.msra.mxu0 0
    %1275 = vmatpush.bf16.msra.mxu0 0
    %1276 = vmatpush.bf16.msra.mxu0 0
    %1277 = vmatpush.bf16.msra.mxu0 %v1256
    %1278 = vmatpush.bf16.msra.mxu0 %v1255
    %1279 = vmatmul.bf16.gmra.mxu0 %v1260
    %v1280 = vpop.f32.mrf.mxu0
    %v1281 = vadd.f32 %v1245, %v1280
    %v1282 = vpop.f32.mrf.mxu0
    %v1283 = vadd.f32 %v1245, %v1282
    %1284 = vmatmul.bf16.gmra.mxu0 %v1263
    %v1285 = vpop.f32.mrf.mxu0
    %v1286 = vadd.f32 %v1245, %v1285
    %v1287 = vpop.f32.mrf.mxu0
    %v1288 = vadd.f32 %v1245, %v1287
    %1289 = vmatmul.bf16.gmra.mxu0 %v1266
    %v1290 = vpop.f32.mrf.mxu0
    %v1291 = vadd.f32 %v1245, %v1290
    %v1292 = vpop.f32.mrf.mxu0
    %v1293 = vadd.f32 %v1245, %v1292
    %1294 = vmatmul.bf16.gmra.mxu0 %v1269
    %v1295 = vpop.f32.mrf.mxu0
    %v1296 = vadd.f32 %v1245, %v1295
    %v1297 = vpop.f32.mrf.mxu0
    %v1298 = vadd.f32 %v1245, %v1297
    %1299 = vdwg.mxu0
    %v1300 = vadd.f32 %v231, %v1281
    %v1301 = vadd.f32 %v232, %v1283
    %v1302 = vadd.f32 %v233, %v1286
    %v1303 = vadd.f32 %v234, %v1288
    %v1304 = vadd.f32 %v235, %v1291
    %v1305 = vadd.f32 %v236, %v1293
    %v1306 = vadd.f32 %v237, %v1296
    %v1307 = vadd.f32 %v238, %v1298
    %v1308 = vld [vmem:[#allocation7] sm:$0x1]
    %v1309 = vld [vmem:[#allocation8] sm:$0x1]
    %v1310 = vsel %vm263, %v1300, 0.0
    %1311 = vadd.xlane.f32.xlu0 %v1310
    %v1312 = vpop.xlane.xlu0 %1311
    %v1313 = vsel %vm263, %v1301, 0.0
    %1314 = vadd.xlane.f32.xlu0 %v1313
    %v1315 = vpop.xlane.xlu0 %1314
    %v1316 = vsel %vm263, %v1302, 0.0
    %1317 = vadd.xlane.f32.xlu0 %v1316
    %v1318 = vpop.xlane.xlu0 %1317
    %v1319 = vsel %vm263, %v1303, 0.0
    %1320 = vadd.xlane.f32.xlu0 %v1319
    %v1321 = vpop.xlane.xlu0 %1320
    %v1322 = vsel %vm263, %v1304, 0.0
    %1323 = vadd.xlane.f32.xlu0 %v1322
    %v1324 = vpop.xlane.xlu0 %1323
    %v1325 = vsel %vm263, %v1305, 0.0
    %1326 = vadd.xlane.f32.xlu0 %v1325
    %v1327 = vpop.xlane.xlu0 %1326
    %v1328 = vsel %vm263, %v1306, 0.0
    %1329 = vadd.xlane.f32.xlu0 %v1328
    %v1330 = vpop.xlane.xlu0 %1329
    %v1331 = vsel %vm263, %v1307, 0.0
    %1332 = vadd.xlane.f32.xlu0 %v1331
    %v1333 = vpop.xlane.xlu0 %1332
    %v1334 = vrcp.pop 32.0
    %v1335 = vmul.f32 32.0, %v1334
    %v1336 = vsub.f32 1.0, %v1335
    %v1337 = vmul.f32 %v1334, %v1336
    %v1338 = vadd.f32 %v1334, %v1337
    %vm1339 = vweird.f32 %v1334
    %v1340 = vsel %vm1339, %v1334, %v1338
    %v1341 = vmul.f32 %v1312, %v1340
    %v1342 = vmul.f32 %v1315, %v1340
    %v1343 = vmul.f32 %v1318, %v1340
    %v1344 = vmul.f32 %v1321, %v1340
    %v1345 = vmul.f32 %v1324, %v1340
    %v1346 = vmul.f32 %v1327, %v1340
    %v1347 = vmul.f32 %v1330, %v1340
    %v1348 = vmul.f32 %v1333, %v1340
    %v1349 = vsub.f32 %v1300, %v1341
    %v1350 = vsub.f32 %v1301, %v1342
    %v1351 = vsub.f32 %v1302, %v1343
    %v1352 = vsub.f32 %v1303, %v1344
    %v1353 = vsub.f32 %v1304, %v1345
    %v1354 = vsub.f32 %v1305, %v1346
    %v1355 = vsub.f32 %v1306, %v1347
    %v1356 = vsub.f32 %v1307, %v1348
    %v1357 = vmul.f32 %v1349, %v1349
    %v1358 = vmul.f32 %v1350, %v1350
    %v1359 = vmul.f32 %v1351, %v1351
    %v1360 = vmul.f32 %v1352, %v1352
    %v1361 = vmul.f32 %v1353, %v1353
    %v1362 = vmul.f32 %v1354, %v1354
    %v1363 = vmul.f32 %v1355, %v1355
    %v1364 = vmul.f32 %v1356, %v1356
    %v1365 = vsel %vm263, %v1357, 0.0
    %1366 = vadd.xlane.f32.xlu0 %v1365
    %v1367 = vpop.xlane.xlu0 %1366
    %v1368 = vsel %vm263, %v1358, 0.0
    %1369 = vadd.xlane.f32.xlu0 %v1368
    %v1370 = vpop.xlane.xlu0 %1369
    %v1371 = vsel %vm263, %v1359, 0.0
    %1372 = vadd.xlane.f32.xlu0 %v1371
    %v1373 = vpop.xlane.xlu0 %1372
    %v1374 = vsel %vm263, %v1360, 0.0
    %1375 = vadd.xlane.f32.xlu0 %v1374
    %v1376 = vpop.xlane.xlu0 %1375
    %v1377 = vsel %vm263, %v1361, 0.0
    %1378 = vadd.xlane.f32.xlu0 %v1377
    %v1379 = vpop.xlane.xlu0 %1378
    %v1380 = vsel %vm263, %v1362, 0.0
    %1381 = vadd.xlane.f32.xlu0 %v1380
    %v1382 = vpop.xlane.xlu0 %1381
    %v1383 = vsel %vm263, %v1363, 0.0
    %1384 = vadd.xlane.f32.xlu0 %v1383
    %v1385 = vpop.xlane.xlu0 %1384
    %v1386 = vsel %vm263, %v1364, 0.0
    %1387 = vadd.xlane.f32.xlu0 %v1386
    %v1388 = vpop.xlane.xlu0 %1387
    %v1389 = vmul.f32 %v1367, %v1340
    %v1390 = vmul.f32 %v1370, %v1340
    %v1391 = vmul.f32 %v1373, %v1340
    %v1392 = vmul.f32 %v1376, %v1340
    %v1393 = vmul.f32 %v1379, %v1340
    %v1394 = vmul.f32 %v1382, %v1340
    %v1395 = vmul.f32 %v1385, %v1340
    %v1396 = vmul.f32 %v1388, %v1340
    %v1397 = vadd.f32 %v1389, 1e-05
    %v1398 = vadd.f32 %v1390, 1e-05
    %v1399 = vadd.f32 %v1391, 1e-05
    %v1400 = vadd.f32 %v1392, 1e-05
    %v1401 = vadd.f32 %v1393, 1e-05
    %v1402 = vadd.f32 %v1394, 1e-05
    %v1403 = vadd.f32 %v1395, 1e-05
    %v1404 = vadd.f32 %v1396, 1e-05
    %v1405 = vrsqrt.pop %v1397
    %v1406 = vmul.f32 %v1405, %v1397
    %v1407 = vmul.f32 %v1406, %v1405
    %v1408 = vmul.f32 0.5, %v1407
    %v1409 = vsub.f32 1.5, %v1408
    %v1410 = vmul.f32 %v1405, %v1409
    %vm1411 = vweird.f32 %v1397
    %vm1412 = vweird.f32 %v1405
    %vm1413 = vmor %vm1411, %vm1412
    %v1414 = vsel %vm1413, %v1405, %v1410
    %v1415 = vrsqrt.pop %v1398
    %v1416 = vmul.f32 %v1415, %v1398
    %v1417 = vmul.f32 %v1416, %v1415
    %v1418 = vmul.f32 0.5, %v1417
    %v1419 = vsub.f32 1.5, %v1418
    %v1420 = vmul.f32 %v1415, %v1419
    %vm1421 = vweird.f32 %v1398
    %vm1422 = vweird.f32 %v1415
    %vm1423 = vmor %vm1421, %vm1422
    %v1424 = vsel %vm1423, %v1415, %v1420
    %v1425 = vrsqrt.pop %v1399
    %v1426 = vmul.f32 %v1425, %v1399
    %v1427 = vmul.f32 %v1426, %v1425
    %v1428 = vmul.f32 0.5, %v1427
    %v1429 = vsub.f32 1.5, %v1428
    %v1430 = vmul.f32 %v1425, %v1429
    %vm1431 = vweird.f32 %v1399
    %vm1432 = vweird.f32 %v1425
    %vm1433 = vmor %vm1431, %vm1432
    %v1434 = vsel %vm1433, %v1425, %v1430
    %v1435 = vrsqrt.pop %v1400
    %v1436 = vmul.f32 %v1435, %v1400
    %v1437 = vmul.f32 %v1436, %v1435
    %v1438 = vmul.f32 0.5, %v1437
    %v1439 = vsub.f32 1.5, %v1438
    %v1440 = vmul.f32 %v1435, %v1439
    %vm1441 = vweird.f32 %v1400
    %vm1442 = vweird.f32 %v1435
    %vm1443 = vmor %vm1441, %vm1442
    %v1444 = vsel %vm1443, %v1435, %v1440
    %v1445 = vrsqrt.pop %v1401
    %v1446 = vmul.f32 %v1445, %v1401
    %v1447 = vmul.f32 %v1446, %v1445
    %v1448 = vmul.f32 0.5, %v1447
    %v1449 = vsub.f32 1.5, %v1448
    %v1450 = vmul.f32 %v1445, %v1449
    %vm1451 = vweird.f32 %v1401
    %vm1452 = vweird.f32 %v1445
    %vm1453 = vmor %vm1451, %vm1452
    %v1454 = vsel %vm1453, %v1445, %v1450
    %v1455 = vrsqrt.pop %v1402
    %v1456 = vmul.f32 %v1455, %v1402
    %v1457 = vmul.f32 %v1456, %v1455
    %v1458 = vmul.f32 0.5, %v1457
    %v1459 = vsub.f32 1.5, %v1458
    %v1460 = vmul.f32 %v1455, %v1459
    %vm1461 = vweird.f32 %v1402
    %vm1462 = vweird.f32 %v1455
    %vm1463 = vmor %vm1461, %vm1462
    %v1464 = vsel %vm1463, %v1455, %v1460
    %v1465 = vrsqrt.pop %v1403
    %v1466 = vmul.f32 %v1465, %v1403
    %v1467 = vmul.f32 %v1466, %v1465
    %v1468 = vmul.f32 0.5, %v1467
    %v1469 = vsub.f32 1.5, %v1468
    %v1470 = vmul.f32 %v1465, %v1469
    %vm1471 = vweird.f32 %v1403
    %vm1472 = vweird.f32 %v1465
    %vm1473 = vmor %vm1471, %vm1472
    %v1474 = vsel %vm1473, %v1465, %v1470
    %v1475 = vrsqrt.pop %v1404
    %v1476 = vmul.f32 %v1475, %v1404
    %v1477 = vmul.f32 %v1476, %v1475
    %v1478 = vmul.f32 0.5, %v1477
    %v1479 = vsub.f32 1.5, %v1478
    %v1480 = vmul.f32 %v1475, %v1479
    %vm1481 = vweird.f32 %v1404
    %vm1482 = vweird.f32 %v1475
    %vm1483 = vmor %vm1481, %vm1482
    %v1484 = vsel %vm1483, %v1475, %v1480
    %v1485 = vmul.f32 %v1349, %v1414
    %v1486 = vmul.f32 %v1350, %v1424
    %v1487 = vmul.f32 %v1351, %v1434
    %v1488 = vmul.f32 %v1352, %v1444
    %v1489 = vmul.f32 %v1353, %v1454
    %v1490 = vmul.f32 %v1354, %v1464
    %v1491 = vmul.f32 %v1355, %v1474
    %v1492 = vmul.f32 %v1356, %v1484
    %v1494 = vperm.slane %v1308, 0
    %v1496 = vmul.f32 %v1485, %v1494
    %v1497 = vmul.f32 %v1486, %v1494
    %v1498 = vmul.f32 %v1487, %v1494
    %v1499 = vmul.f32 %v1488, %v1494
    %v1500 = vmul.f32 %v1489, %v1494
    %v1501 = vmul.f32 %v1490, %v1494
    %v1502 = vmul.f32 %v1491, %v1494
    %v1503 = vmul.f32 %v1492, %v1494
    %v1505 = vperm.slane %v1309, 0
    %v1507 = vadd.f32 %v1496, %v1505
    %v1508 = vadd.f32 %v1497, %v1505
    %v1509 = vadd.f32 %v1498, %v1505
    %v1510 = vadd.f32 %v1499, %v1505
    %v1511 = vadd.f32 %v1500, %v1505
    %v1512 = vadd.f32 %v1501, %v1505
    %v1513 = vadd.f32 %v1502, %v1505
    %v1514 = vadd.f32 %v1503, %v1505
    %v1515 = vpack.c.bf16 %v1508, %v1507
    %v1516 = vpack.c.bf16 %v1510, %v1509
    %v1517 = vpack.c.bf16 %v1512, %v1511
    %v1518 = vpack.c.bf16 %v1514, %v1513
    %v1519 = vld [vmem:[#allocation10] sm:$0xf]
    %v1520 = vld [vmem:[#allocation10 + $0x4] sm:$0xf]
    %v1521 = vld [vmem:[#allocation10 + $0x8] sm:$0xf]
    %v1522 = vld [vmem:[#allocation10 + $0xc] sm:$0xf]
    %v1523 = vld [vmem:[#allocation11] sm:$0x1]
    %v1525 = vperm.slane %v1523, 0
    %v1531 = vunpack.c.l.b16 %v1519
    %v1532 = vunpack.c.l.b16 %v1520
    %v1533 = vunpack.c.l.b16 %v1521
    %v1534 = vunpack.c.l.b16 %v1522
    %v1535 = vpack.c.b16 %v1532, %v1531
    %v1536 = vpack.c.b16 %v1534, %v1533
    %v1540 = vsel %vm263, %v1515, 0
    %v1543 = vsel %vm263, %v1516, 0
    %v1546 = vsel %vm263, %v1517, 0
    %v1549 = vsel %vm263, %v1518, 0
    %1551 = vmatpush.bf16.msra.mxu0 0
    %1552 = vmatpush.bf16.msra.mxu0 0
    %1553 = vmatpush.bf16.msra.mxu0 0
    %1554 = vmatpush.bf16.msra.mxu0 0
    %1555 = vmatpush.bf16.msra.mxu0 0
    %1556 = vmatpush.bf16.msra.mxu0 0
    %1557 = vmatpush.bf16.msra.mxu0 %v1536
    %1558 = vmatpush.bf16.msra.mxu0 %v1535
    %1559 = vmatmul.bf16.gmra.mxu0 %v1540
    %v1560 = vpop.f32.mrf.mxu0
    %v1561 = vadd.f32 %v1525, %v1560
    %v1562 = vpop.f32.mrf.mxu0
    %v1563 = vadd.f32 %v1525, %v1562
    %1564 = vmatmul.bf16.gmra.mxu0 %v1543
    %v1565 = vpop.f32.mrf.mxu0
    %v1566 = vadd.f32 %v1525, %v1565
    %v1567 = vpop.f32.mrf.mxu0
    %v1568 = vadd.f32 %v1525, %v1567
    %1569 = vmatmul.bf16.gmra.mxu0 %v1546
    %v1570 = vpop.f32.mrf.mxu0
    %v1571 = vadd.f32 %v1525, %v1570
    %v1572 = vpop.f32.mrf.mxu0
    %v1573 = vadd.f32 %v1525, %v1572
    %1574 = vmatmul.bf16.gmra.mxu0 %v1549
    %v1575 = vpop.f32.mrf.mxu0
    %v1576 = vadd.f32 %v1525, %v1575
    %v1577 = vpop.f32.mrf.mxu0
    %v1578 = vadd.f32 %v1525, %v1577
    %1579 = vdwg.mxu0
    %v1580 = vmax.f32 %v1561, 0.0
    %v1581 = vmax.f32 %v1563, 0.0
    %v1582 = vmax.f32 %v1566, 0.0
    %v1583 = vmax.f32 %v1568, 0.0
    %v1584 = vmax.f32 %v1571, 0.0
    %v1585 = vmax.f32 %v1573, 0.0
    %v1586 = vmax.f32 %v1576, 0.0
    %v1587 = vmax.f32 %v1578, 0.0
    %v1588 = vpack.c.bf16 %v1581, %v1580
    %v1589 = vpack.c.bf16 %v1583, %v1582
    %v1590 = vpack.c.bf16 %v1585, %v1584
    %v1591 = vpack.c.bf16 %v1587, %v1586
    %v1592 = vld [vmem:[%s9] sm:$0xf]
    %v1593 = vld [vmem:[%s9 + $0x4] sm:$0xf]
    %v1594 = vld [vmem:[%s9 + $0x8] sm:$0xf]
    %v1595 = vld [vmem:[%s9 + $0xc] sm:$0xf]
    %v1596 = vld [vmem:[%s9 + $0x10] sm:$0xf]
    %v1597 = vld [vmem:[%s9 + $0x14] sm:$0xf]
    %v1598 = vld [vmem:[%s9 + $0x18] sm:$0xf]
    %v1599 = vld [vmem:[%s9 + $0x1c] sm:$0xf]
    %v1600 = vld [vmem:[%s9 + $0x20] sm:$0xf]
    %v1601 = vld [vmem:[%s9 + $0x24] sm:$0xf]
    %v1602 = vld [vmem:[%s9 + $0x28] sm:$0xf]
    %v1603 = vld [vmem:[%s9 + $0x2c] sm:$0xf]
    %v1604 = vld [vmem:[%s9 + $0x30] sm:$0xf]
    %v1605 = vld [vmem:[%s9 + $0x34] sm:$0xf]
    %v1606 = vld [vmem:[%s9 + $0x38] sm:$0xf]
    %v1607 = vld [vmem:[%s9 + $0x3c] sm:$0xf]
    %v1608 = vld [vmem:[#allocation13] sm:$0x1]
    %v1610 = vperm.slane %v1608, 0
    %v1628 = vunpack.c.l.b16 %v1592
    %v1629 = vunpack.c.l.b16 %v1593
    %v1630 = vunpack.c.l.b16 %v1594
    %v1631 = vunpack.c.l.b16 %v1595
    %v1632 = vunpack.c.l.b16 %v1596
    %v1633 = vunpack.c.l.b16 %v1597
    %v1634 = vunpack.c.l.b16 %v1598
    %v1635 = vunpack.c.l.b16 %v1599
    %v1636 = vunpack.c.l.b16 %v1600
    %v1637 = vunpack.c.l.b16 %v1601
    %v1638 = vunpack.c.l.b16 %v1602
    %v1639 = vunpack.c.l.b16 %v1603
    %v1640 = vunpack.c.l.b16 %v1604
    %v1641 = vunpack.c.l.b16 %v1605
    %v1642 = vunpack.c.l.b16 %v1606
    %v1643 = vunpack.c.l.b16 %v1607
    %v1644 = vpack.c.b16 %v1629, %v1628
    %v1645 = vpack.c.b16 %v1631, %v1630
    %v1646 = vpack.c.b16 %v1633, %v1632
    %v1647 = vpack.c.b16 %v1635, %v1634
    %v1648 = vpack.c.b16 %v1637, %v1636
    %v1649 = vpack.c.b16 %v1639, %v1638
    %v1650 = vpack.c.b16 %v1641, %v1640
    %v1651 = vpack.c.b16 %v1643, %v1642
    %1660 = vmatpush.bf16.msra.mxu0 %v1651
    %1661 = vmatpush.bf16.msra.mxu0 %v1650
    %1662 = vmatpush.bf16.msra.mxu0 %v1649
    %1663 = vmatpush.bf16.msra.mxu0 %v1648
    %1664 = vmatpush.bf16.msra.mxu0 %v1647
    %1665 = vmatpush.bf16.msra.mxu0 %v1646
    %1666 = vmatpush.bf16.msra.mxu0 %v1645
    %1667 = vmatpush.bf16.msra.mxu0 %v1644
    %1668 = vmatmul.bf16.gmra.mxu0 %v1588
    %v1669 = vpop.f32.mrf.mxu0
    %v1670 = vadd.f32 %v1610, %v1669
    %v1671 = vpop.f32.mrf.mxu0
    %v1672 = vadd.f32 %v1610, %v1671
    %1673 = vmatmul.bf16.gmra.mxu0 %v1589
    %v1674 = vpop.f32.mrf.mxu0
    %v1675 = vadd.f32 %v1610, %v1674
    %v1676 = vpop.f32.mrf.mxu0
    %v1677 = vadd.f32 %v1610, %v1676
    %1678 = vmatmul.bf16.gmra.mxu0 %v1590
    %v1679 = vpop.f32.mrf.mxu0
    %v1680 = vadd.f32 %v1610, %v1679
    %v1681 = vpop.f32.mrf.mxu0
    %v1682 = vadd.f32 %v1610, %v1681
    %1683 = vmatmul.bf16.gmra.mxu0 %v1591
    %v1684 = vpop.f32.mrf.mxu0
    %v1685 = vadd.f32 %v1610, %v1684
    %v1686 = vpop.f32.mrf.mxu0
    %v1687 = vadd.f32 %v1610, %v1686
    %1688 = vdwg.mxu0
    %v1689 = vadd.f32 %v1507, %v1670
    %v1690 = vadd.f32 %v1508, %v1672
    %v1691 = vadd.f32 %v1509, %v1675
    %v1692 = vadd.f32 %v1510, %v1677
    %v1693 = vadd.f32 %v1511, %v1680
    %v1694 = vadd.f32 %v1512, %v1682
    %v1695 = vadd.f32 %v1513, %v1685
    %v1696 = vadd.f32 %v1514, %v1687
    %v1697 = vld [vmem:[#allocation14] sm:$0x1]
    %v1698 = vld [vmem:[#allocation16] sm:$0x1]
    %v1699 = vsel %vm263, %v1689, 0.0
    %1700 = vadd.xlane.f32.xlu0 %v1699
    %v1701 = vpop.xlane.xlu0 %1700
    %v1702 = vsel %vm263, %v1690, 0.0
    %1703 = vadd.xlane.f32.xlu0 %v1702
    %v1704 = vpop.xlane.xlu0 %1703
    %v1705 = vsel %vm263, %v1691, 0.0
    %1706 = vadd.xlane.f32.xlu0 %v1705
    %v1707 = vpop.xlane.xlu0 %1706
    %v1708 = vsel %vm263, %v1692, 0.0
    %1709 = vadd.xlane.f32.xlu0 %v1708
    %v1710 = vpop.xlane.xlu0 %1709
    %v1711 = vsel %vm263, %v1693, 0.0
    %1712 = vadd.xlane.f32.xlu0 %v1711
    %v1713 = vpop.xlane.xlu0 %1712
    %v1714 = vsel %vm263, %v1694, 0.0
    %1715 = vadd.xlane.f32.xlu0 %v1714
    %v1716 = vpop.xlane.xlu0 %1715
    %v1717 = vsel %vm263, %v1695, 0.0
    %1718 = vadd.xlane.f32.xlu0 %v1717
    %v1719 = vpop.xlane.xlu0 %1718
    %v1720 = vsel %vm263, %v1696, 0.0
    %1721 = vadd.xlane.f32.xlu0 %v1720
    %v1722 = vpop.xlane.xlu0 %1721
    %v1723 = vmul.f32 %v1701, %v1340
    %v1724 = vmul.f32 %v1704, %v1340
    %v1725 = vmul.f32 %v1707, %v1340
    %v1726 = vmul.f32 %v1710, %v1340
    %v1727 = vmul.f32 %v1713, %v1340
    %v1728 = vmul.f32 %v1716, %v1340
    %v1729 = vmul.f32 %v1719, %v1340
    %v1730 = vmul.f32 %v1722, %v1340
    %v1731 = vsub.f32 %v1689, %v1723
    %v1732 = vsub.f32 %v1690, %v1724
    %v1733 = vsub.f32 %v1691, %v1725
    %v1734 = vsub.f32 %v1692, %v1726
    %v1735 = vsub.f32 %v1693, %v1727
    %v1736 = vsub.f32 %v1694, %v1728
    %v1737 = vsub.f32 %v1695, %v1729
    %v1738 = vsub.f32 %v1696, %v1730
    %v1739 = vmul.f32 %v1731, %v1731
    %v1740 = vmul.f32 %v1732, %v1732
    %v1741 = vmul.f32 %v1733, %v1733
    %v1742 = vmul.f32 %v1734, %v1734
    %v1743 = vmul.f32 %v1735, %v1735
    %v1744 = vmul.f32 %v1736, %v1736
    %v1745 = vmul.f32 %v1737, %v1737
    %v1746 = vmul.f32 %v1738, %v1738
    %v1747 = vsel %vm263, %v1739, 0.0
    %1748 = vadd.xlane.f32.xlu0 %v1747
    %v1749 = vpop.xlane.xlu0 %1748
    %v1750 = vsel %vm263, %v1740, 0.0
    %1751 = vadd.xlane.f32.xlu0 %v1750
    %v1752 = vpop.xlane.xlu0 %1751
    %v1753 = vsel %vm263, %v1741, 0.0
    %1754 = vadd.xlane.f32.xlu0 %v1753
    %v1755 = vpop.xlane.xlu0 %1754
    %v1756 = vsel %vm263, %v1742, 0.0
    %1757 = vadd.xlane.f32.xlu0 %v1756
    %v1758 = vpop.xlane.xlu0 %1757
    %v1759 = vsel %vm263, %v1743, 0.0
    %1760 = vadd.xlane.f32.xlu0 %v1759
    %v1761 = vpop.xlane.xlu0 %1760
    %v1762 = vsel %vm263, %v1744, 0.0
    %1763 = vadd.xlane.f32.xlu0 %v1762
    %v1764 = vpop.xlane.xlu0 %1763
    %v1765 = vsel %vm263, %v1745, 0.0
    %1766 = vadd.xlane.f32.xlu0 %v1765
    %v1767 = vpop.xlane.xlu0 %1766
    %v1768 = vsel %vm263, %v1746, 0.0
    %1769 = vadd.xlane.f32.xlu0 %v1768
    %v1770 = vpop.xlane.xlu0 %1769
    %v1771 = vmul.f32 %v1749, %v1340
    %v1772 = vmul.f32 %v1752, %v1340
    %v1773 = vmul.f32 %v1755, %v1340
    %v1774 = vmul.f32 %v1758, %v1340
    %v1775 = vmul.f32 %v1761, %v1340
    %v1776 = vmul.f32 %v1764, %v1340
    %v1777 = vmul.f32 %v1767, %v1340
    %v1778 = vmul.f32 %v1770, %v1340
    %v1779 = vadd.f32 %v1771, 1e-05
    %v1780 = vadd.f32 %v1772, 1e-05
    %v1781 = vadd.f32 %v1773, 1e-05
    %v1782 = vadd.f32 %v1774, 1e-05
    %v1783 = vadd.f32 %v1775, 1e-05
    %v1784 = vadd.f32 %v1776, 1e-05
    %v1785 = vadd.f32 %v1777, 1e-05
    %v1786 = vadd.f32 %v1778, 1e-05
    %v1787 = vrsqrt.pop %v1779
    %v1788 = vmul.f32 %v1787, %v1779
    %v1789 = vmul.f32 %v1788, %v1787
    %v1790 = vmul.f32 0.5, %v1789
    %v1791 = vsub.f32 1.5, %v1790
    %v1792 = vmul.f32 %v1787, %v1791
    %vm1793 = vweird.f32 %v1779
    %vm1794 = vweird.f32 %v1787
    %vm1795 = vmor %vm1793, %vm1794
    %v1796 = vsel %vm1795, %v1787, %v1792
    %v1797 = vrsqrt.pop %v1780
    %v1798 = vmul.f32 %v1797, %v1780
    %v1799 = vmul.f32 %v1798, %v1797
    %v1800 = vmul.f32 0.5, %v1799
    %v1801 = vsub.f32 1.5, %v1800
    %v1802 = vmul.f32 %v1797, %v1801
    %vm1803 = vweird.f32 %v1780
    %vm1804 = vweird.f32 %v1797
    %vm1805 = vmor %vm1803, %vm1804
    %v1806 = vsel %vm1805, %v1797, %v1802
    %v1807 = vrsqrt.pop %v1781
    %v1808 = vmul.f32 %v1807, %v1781
    %v1809 = vmul.f32 %v1808, %v1807
    %v1810 = vmul.f32 0.5, %v1809
    %v1811 = vsub.f32 1.5, %v1810
    %v1812 = vmul.f32 %v1807, %v1811
    %vm1813 = vweird.f32 %v1781
    %vm1814 = vweird.f32 %v1807
    %vm1815 = vmor %vm1813, %vm1814
    %v1816 = vsel %vm1815, %v1807, %v1812
    %v1817 = vrsqrt.pop %v1782
    %v1818 = vmul.f32 %v1817, %v1782
    %v1819 = vmul.f32 %v1818, %v1817
    %v1820 = vmul.f32 0.5, %v1819
    %v1821 = vsub.f32 1.5, %v1820
    %v1822 = vmul.f32 %v1817, %v1821
    %vm1823 = vweird.f32 %v1782
    %vm1824 = vweird.f32 %v1817
    %vm1825 = vmor %vm1823, %vm1824
    %v1826 = vsel %vm1825, %v1817, %v1822
    %v1827 = vrsqrt.pop %v1783
    %v1828 = vmul.f32 %v1827, %v1783
    %v1829 = vmul.f32 %v1828, %v1827
    %v1830 = vmul.f32 0.5, %v1829
    %v1831 = vsub.f32 1.5, %v1830
    %v1832 = vmul.f32 %v1827, %v1831
    %vm1833 = vweird.f32 %v1783
    %vm1834 = vweird.f32 %v1827
    %vm1835 = vmor %vm1833, %vm1834
    %v1836 = vsel %vm1835, %v1827, %v1832
    %v1837 = vrsqrt.pop %v1784
    %v1838 = vmul.f32 %v1837, %v1784
    %v1839 = vmul.f32 %v1838, %v1837
    %v1840 = vmul.f32 0.5, %v1839
    %v1841 = vsub.f32 1.5, %v1840
    %v1842 = vmul.f32 %v1837, %v1841
    %vm1843 = vweird.f32 %v1784
    %vm1844 = vweird.f32 %v1837
    %vm1845 = vmor %vm1843, %vm1844
    %v1846 = vsel %vm1845, %v1837, %v1842
    %v1847 = vrsqrt.pop %v1785
    %v1848 = vmul.f32 %v1847, %v1785
    %v1849 = vmul.f32 %v1848, %v1847
    %v1850 = vmul.f32 0.5, %v1849
    %v1851 = vsub.f32 1.5, %v1850
    %v1852 = vmul.f32 %v1847, %v1851
    %vm1853 = vweird.f32 %v1785
    %vm1854 = vweird.f32 %v1847
    %vm1855 = vmor %vm1853, %vm1854
    %v1856 = vsel %vm1855, %v1847, %v1852
    %v1857 = vrsqrt.pop %v1786
    %v1858 = vmul.f32 %v1857, %v1786
    %v1859 = vmul.f32 %v1858, %v1857
    %v1860 = vmul.f32 0.5, %v1859
    %v1861 = vsub.f32 1.5, %v1860
    %v1862 = vmul.f32 %v1857, %v1861
    %vm1863 = vweird.f32 %v1786
    %vm1864 = vweird.f32 %v1857
    %vm1865 = vmor %vm1863, %vm1864
    %v1866 = vsel %vm1865, %v1857, %v1862
    %v1867 = vmul.f32 %v1731, %v1796
    %v1868 = vmul.f32 %v1732, %v1806
    %v1869 = vmul.f32 %v1733, %v1816
    %v1870 = vmul.f32 %v1734, %v1826
    %v1871 = vmul.f32 %v1735, %v1836
    %v1872 = vmul.f32 %v1736, %v1846
    %v1873 = vmul.f32 %v1737, %v1856
    %v1874 = vmul.f32 %v1738, %v1866
    %v1876 = vperm.slane %v1697, 0
    %v1878 = vmul.f32 %v1867, %v1876
    %v1879 = vmul.f32 %v1868, %v1876
    %v1880 = vmul.f32 %v1869, %v1876
    %v1881 = vmul.f32 %v1870, %v1876
    %v1882 = vmul.f32 %v1871, %v1876
    %v1883 = vmul.f32 %v1872, %v1876
    %v1884 = vmul.f32 %v1873, %v1876
    %v1885 = vmul.f32 %v1874, %v1876
    %v1887 = vperm.slane %v1698, 0
    %v1889 = vadd.f32 %v1878, %v1887
    %v1890 = vadd.f32 %v1879, %v1887
    %v1891 = vadd.f32 %v1880, %v1887
    %v1892 = vadd.f32 %v1881, %v1887
    %v1893 = vadd.f32 %v1882, %v1887
    %v1894 = vadd.f32 %v1883, %v1887
    %v1895 = vadd.f32 %v1884, %v1887
    %v1896 = vadd.f32 %v1885, %v1887
    %v1897 = vpack.c.bf16 %v1890, %v1889
    %v1898 = vpack.c.bf16 %v1892, %v1891
    %v1899 = vpack.c.bf16 %v1894, %v1893
    %v1900 = vpack.c.bf16 %v1896, %v1895
    %v1901 = vld [vmem:[%s13] sm:$0xf]
    %v1902 = vld [vmem:[%s13 + $0x4] sm:$0xf]
    %v1903 = vld [vmem:[%s13 + $0x8] sm:$0xf]
    %v1904 = vld [vmem:[%s13 + $0xc] sm:$0xf]
    %v1909 = vunpack.c.l.b16 %v1901
    %v1910 = vunpack.c.l.b16 %v1902
    %v1911 = vunpack.c.l.b16 %v1903
    %v1912 = vunpack.c.l.b16 %v1904
    %v1913 = vpack.c.b16 %v1910, %v1909
    %v1914 = vpack.c.b16 %v1912, %v1911
    %v1918 = vsel %vm263, %v1897, 0
    %v1921 = vsel %vm263, %v1898, 0
    %v1924 = vsel %vm263, %v1899, 0
    %v1927 = vsel %vm263, %v1900, 0
    %1929 = vmatpush.bf16.msra.mxu0 0
    %1930 = vmatpush.bf16.msra.mxu0 0
    %1931 = vmatpush.bf16.msra.mxu0 0
    %1932 = vmatpush.bf16.msra.mxu0 0
    %1933 = vmatpush.bf16.msra.mxu0 0
    %1934 = vmatpush.bf16.msra.mxu0 0
    %1935 = vmatpush.bf16.msra.mxu0 %v1914
    %1936 = vmatpush.bf16.msra.mxu0 %v1913
    %1937 = vmatmul.bf16.gmra.mxu0 %v1918
    %v1938 = vpop.f32.mrf.mxu0
    %v1939 = vadd.f32 0.0, %v1938
    %v1940 = vpop.f32.mrf.mxu0
    %v1941 = vadd.f32 0.0, %v1940
    %1942 = vmatmul.bf16.gmra.mxu0 %v1921
    %v1943 = vpop.f32.mrf.mxu0
    %v1944 = vadd.f32 0.0, %v1943
    %v1945 = vpop.f32.mrf.mxu0
    %v1946 = vadd.f32 0.0, %v1945
    %1947 = vmatmul.bf16.gmra.mxu0 %v1924
    %v1948 = vpop.f32.mrf.mxu0
    %v1949 = vadd.f32 0.0, %v1948
    %v1950 = vpop.f32.mrf.mxu0
    %v1951 = vadd.f32 0.0, %v1950
    %1952 = vmatmul.bf16.gmra.mxu0 %v1927
    %v1953 = vpop.f32.mrf.mxu0
    %v1954 = vadd.f32 0.0, %v1953
    %v1955 = vpop.f32.mrf.mxu0
    %v1956 = vadd.f32 0.0, %v1955
    %1957 = vdwg.mxu0
    %v1958 = vld [vmem:[#allocation20] sm:$0xff]
    %v1959 = vmul.f32 %v1939, %v1958
    %v1960 = vmul.f32 %v1941, %v1958
    %v1961 = vmul.f32 %v1944, %v1958
    %v1962 = vmul.f32 %v1946, %v1958
    %v1963 = vmul.f32 %v1949, %v1958
    %v1964 = vmul.f32 %v1951, %v1958
    %v1965 = vmul.f32 %v1954, %v1958
    %v1966 = vmul.f32 %v1956, %v1958
    %vm1967 = vcmask 392192
    %v1968 = vsel %vm1967, %v1959, 0.0
    %v1969 = vrot.slane %v1968, 4
    %v1970 = vadd.f32 %v1968, %v1969
    %v1971 = vrot.slane %v1970, 2
    %v1972 = vadd.f32 %v1970, %v1971
    %v1973 = vrot.slane %v1972, 1
    %v1974 = vadd.f32 %v1972, %v1973
    %v1975 = vsel %vm1967, %v1960, 0.0
    %v1976 = vrot.slane %v1975, 4
    %v1977 = vadd.f32 %v1975, %v1976
    %v1978 = vrot.slane %v1977, 2
    %v1979 = vadd.f32 %v1977, %v1978
    %v1980 = vrot.slane %v1979, 1
    %v1981 = vadd.f32 %v1979, %v1980
    %v1982 = vsel %vm1967, %v1961, 0.0
    %v1983 = vrot.slane %v1982, 4
    %v1984 = vadd.f32 %v1982, %v1983
    %v1985 = vrot.slane %v1984, 2
    %v1986 = vadd.f32 %v1984, %v1985
    %v1987 = vrot.slane %v1986, 1
    %v1988 = vadd.f32 %v1986, %v1987
    %v1989 = vsel %vm1967, %v1962, 0.0
    %v1990 = vrot.slane %v1989, 4
    %v1991 = vadd.f32 %v1989, %v1990
    %v1992 = vrot.slane %v1991, 2
    %v1993 = vadd.f32 %v1991, %v1992
    %v1994 = vrot.slane %v1993, 1
    %v1995 = vadd.f32 %v1993, %v1994
    %v1996 = vsel %vm1967, %v1963, 0.0
    %v1997 = vrot.slane %v1996, 4
    %v1998 = vadd.f32 %v1996, %v1997
    %v1999 = vrot.slane %v1998, 2
    %v2000 = vadd.f32 %v1998, %v1999
    %v2001 = vrot.slane %v2000, 1
    %v2002 = vadd.f32 %v2000, %v2001
    %v2003 = vsel %vm1967, %v1964, 0.0
    %v2004 = vrot.slane %v2003, 4
    %v2005 = vadd.f32 %v2003, %v2004
    %v2006 = vrot.slane %v2005, 2
    %v2007 = vadd.f32 %v2005, %v2006
    %v2008 = vrot.slane %v2007, 1
    %v2009 = vadd.f32 %v2007, %v2008
    %v2010 = vsel %vm1967, %v1965, 0.0
    %v2011 = vrot.slane %v2010, 4
    %v2012 = vadd.f32 %v2010, %v2011
    %v2013 = vrot.slane %v2012, 2
    %v2014 = vadd.f32 %v2012, %v2013
    %v2015 = vrot.slane %v2014, 1
    %v2016 = vadd.f32 %v2014, %v2015
    %v2017 = vsel %vm1967, %v1966, 0.0
    %v2018 = vrot.slane %v2017, 4
    %v2019 = vadd.f32 %v2017, %v2018
    %v2020 = vrot.slane %v2019, 2
    %v2021 = vadd.f32 %v2019, %v2020
    %v2022 = vrot.slane %v2021, 1
    %v2023 = vadd.f32 %v2021, %v2022
    %v2024 = vld [vmem:[%s18] sm:$0xff]
    %v2025 = vld [vmem:[%s18 + $0x8] sm:$0xff]
    %v2026 = vld [vmem:[%s18 + $0x10] sm:$0xff]
    %v2027 = vld [vmem:[%s18 + $0x18] sm:$0xff]
    %v2028 = vld [vmem:[%s18 + $0x20] sm:$0xff]
    %v2029 = vld [vmem:[%s18 + $0x28] sm:$0xff]
    %v2030 = vld [vmem:[#allocation17] sm:$0x1]
    %v2032 = vperm.slane %v2030, 0
    %vm2042 = vcmask 1041409
    %v2043 = vsel %vm2042, %v1981, %v1974
    %vm2044 = vcmask 1042434
    %v2045 = vsel %vm2044, %v1988, %v2043
    %vm2046 = vcmask 1043459
    %v2047 = vsel %vm2046, %v1995, %v2045
    %vm2048 = vcmask 1044484
    %v2049 = vsel %vm2048, %v2002, %v2047
    %vm2050 = vcmask 1045509
    %v2051 = vsel %vm2050, %v2009, %v2049
    %vm2052 = vcmask 1046534
    %v2053 = vsel %vm2052, %v2016, %v2051
    %vm2054 = vcmask 1047559
    %v2055 = vsel %vm2054, %v2023, %v2053
    %v2056 = vsel %vm1967, %v2055, 0
    %2058 = vmatpush.msra.mxu0 0.0
    %2059 = vmatpush.msra.mxu0 0.0
    %2060 = vmatpush.msra.mxu0 0.0
    %2061 = vmatpush.msra.mxu0 0.0
    %2062 = vmatpush.msra.mxu0 0.0
    %2063 = vmatpush.msra.mxu0 0.0
    %2064 = vmatpush.msra.mxu0 0.0
    %2065 = vmatpush.msra.mxu0 0.0
    %2066 = vmatpush.msra.mxu0 0.0
    %2067 = vmatpush.msra.mxu0 0.0
    %2068 = vmatpush.msra.mxu0 %v2029
    %2069 = vmatpush.msra.mxu0 %v2028
    %2070 = vmatpush.msra.mxu0 %v2027
    %2071 = vmatpush.msra.mxu0 %v2026
    %2072 = vmatpush.msra.mxu0 %v2025
    %2073 = vmatpush.msra.mxu0 %v2024
    %2074 = vmatmul.f32.gmra.mxu0 %v2056
    %v2075 = vpop.f32.mrf.mxu0
    %v2076 = vadd.f32 %v2032, %v2075
    %2077 = vdwg.mxu0
    %vm2078 = vcmask 48128
    %v2079 = vsel %vm2078, %v2076, -inf
    %2080 = vmax.xlane.f32.xlu0 %v2079
    %v2081 = vpop.xlane.xlu0 %2080
    %v2082 = vsub.f32 %v2076, %v2081
    %v2083 = vmul.f32 %v2082, 1.442695
    %v2084 = vpow.pop %v2083
    %v2085 = vsel %vm2078, %v2084, 0.0
    %2086 = vadd.xlane.f32.xlu0 %v2085
    %v2087 = vpop.xlane.xlu0 %2086
    %v2088 = vrcp.pop %v2087
    %v2089 = vmul.f32 %v2087, %v2088
    %v2090 = vsub.f32 1.0, %v2089
    %v2091 = vmul.f32 %v2088, %v2090
    %v2092 = vadd.f32 %v2088, %v2091
    %vm2093 = vweird.f32 %v2087
    %vm2094 = vweird.f32 %v2088
    %vm2095 = vmor %vm2093, %vm2094
    %v2096 = vsel %vm2095, %v2088, %v2092
    %v2097 = vand.u32 2147483647, %v2087
    %vm2098 = vcmp.eq.f32.partialorder %v2097, 8.507059e+37
    %v2099 = vand.u32 %v2087, 2147483648
    %v2100 = vor.u32 1.1754944e-38, %v2099
    %v2101 = vsel %vm2098, %v2100, %v2096
    %v2102 = vmul.f32 %v2084, %v2101
    %2103 = vst.msk [vmem:[#allocation22] sm:$0xff] %vm2078, %v2102
    // Predicated region
    $region126: #{tpu_custom_call.1} parent=1 // pred_check
      _
    $region127: #{tpu_custom_call.1} parent=1 // pred_check_branch
      %2105 = sbr.rel (0) target = $region129
    $region128: #{tpu_custom_call.1} parent=1 // pred_region
      %2107 = vsyncadd [#allocation4], 0
      %s2109 = sshll.u32 [#allocation22], 4
      %s2110 = int_to_ptr.vmem [resolvable:$true] %s2109
      %s2111 = sshll.u32 %s19, 4
      %s2112 = int_to_ptr.hbm [resolvable:$true] %s2111
      %2114 = dma.vmem_to_hbm [thread:$0]  %s2110, 128, %s2112, [#allocation4]
    $region129: #{tpu_custom_call.1} parent=1 // pred_fallthru
      _
    // Predicated region
    $region130: #{tpu_custom_call.1} parent=1 // pred_check
      _
    $region131: #{tpu_custom_call.1} parent=1 // pred_check_branch
      %2116 = sbr.rel (0) target = $region133
    $region132: #{tpu_custom_call.1} parent=1 // pred_region
      %2118 = dma.done [#allocation4], 128
    $region133: #{tpu_custom_call.1} parent=1 // pred_fallthru
      _
    %2119 = vsyncpa [#allocation3], 1
    %2120 = vsyncpa [#allocation6], 1
    %2121 = vsyncpa [#allocation9], 1
    %2122 = vsyncpa [#allocation12], 1
    %2123 = vsyncpa [#allocation15], 1
    %2124 = vsyncpa [#allocation18], 1
    %2125 = vsyncpa [#allocation21], 1
    %2126 = vsyncpa [#allocation4], 1

</llo_original>
